<compile_context>
chip_gen: v7x
topology: tpu7x:2x2x1
jax: 0.10.0
libtpu: 0.0.40
codegen_flags: <defaults>
</compile_context>

<pallas_src>
import functools

import jax
import jax.numpy as jnp
from jax.experimental import pallas as pl
from jax.experimental.pallas import tpu as pltpu


def _sepconv_kernel(x_ref, dw_ref, pw_ref, bias_ref, o_ref, acc_ref, *,
                    kh_size, kw_size, stride, dilation):
    # x_ref:    (1, Hp, Wp, C)      padded input for one batch element (resident)
    # dw_ref:   (KH*KW, C)          BN-folded depthwise weights, f32
    # pw_ref:   (C, Cout_pad)       pointwise (1x1 conv) weights, bf16
    # bias_ref: (1, Cout_pad)       BN shift folded through the pointwise conv, f32
    # o_ref:    (1, TH, Wo, Cout_pad)
    # acc_ref:  (TH, Wo, C)         f32 VMEM scratch accumulator
    TH = o_ref.shape[1]
    Wo = o_ref.shape[2]
    cout_pad = o_ref.shape[3]
    C = x_ref.shape[3]

    # Row offset of this output tile inside the padded input.
    h_base = pl.multiple_of(pl.program_id(1) * (TH * stride), TH * stride)

    def _win(start, size):
        # Strided window only when stride > 1 (plain dynamic slice otherwise).
        return pl.ds(start, size) if stride == 1 else pl.ds(start, size, stride)

    dwv = dw_ref[...]                                   # (KH*KW, C), tiny
    first = True
    # Depthwise convolution, unrolled over the (small, static) kernel window.
    for kh in range(kh_size):
        for kw in range(kw_size):
            patch = x_ref[0,
                          _win(h_base + kh * dilation, TH),
                          _win(kw * dilation, Wo),
                          :]                            # (TH, Wo, C) ref-side read
            contrib = patch * dwv[kh * kw_size + kw][None, None, :]
            if first:
                acc_ref[...] = contrib
                first = False
            else:
                acc_ref[...] += contrib

    # Pointwise 1x1 conv == matmul over channels on the MXU (bf16 in, f32 acc).
    a = acc_ref[...].reshape(TH * Wo, C).astype(pw_ref.dtype)
    y = jnp.dot(a, pw_ref[...], preferred_element_type=jnp.float32)
    y = y + bias_ref[...]                               # (1, Cout_pad) broadcast
    o_ref[0] = y.reshape(TH, Wo, cout_pad).astype(o_ref.dtype)


def _pick_tile_h(ho, wo):
    """Largest multiple-of-8 divisor of `ho` (smaller than ho when possible)
    with matmul height TH*Wo <= 1024; falls back to the full extent."""
    best = ho
    th = 8
    while th < ho:
        if ho % th == 0 and th * wo <= 1024:
            best = th
        th += 8
    return best


def separable_conv2d(x_nchw, dw_khwc, gamma, beta, running_mean, running_var,
                     pw_c_cout, *, kernel_size=3, stride=1, dilation=1,
                     eps=1e-5):
    """Forward pass of SeparableConv2d. x_nchw: (N, C, H, W) float32."""
    N, C, H, W = x_nchw.shape
    Cout = pw_c_cout.shape[1]

    # fixedPadding (glue, plain JAX)
    pad = dilation * (kernel_size - 1)
    pad_beg = pad // 2
    pad_end = pad - pad_beg

    # TODO(synk): the NCHW<->NHWC transposes and jnp.pad are extra HBM round
    # trips around a memory-bound kernel; in production fuse the padding into
    # the kernel (boundary masking) and keep the model NHWC end-to-end.
    x_nhwc = jnp.transpose(x_nchw, (0, 2, 3, 1)).astype(jnp.float32)
    x_pad = jnp.pad(x_nhwc, ((0, 0), (pad_beg, pad_end),
                             (pad_beg, pad_end), (0, 0)))
    Hp = H + pad
    Wp = W + pad
    Ho = (Hp - dilation * (kernel_size - 1) - 1) // stride + 1
    Wo = (Wp - dilation * (kernel_size - 1) - 1) // stride + 1

    # Fold BatchNorm (inference mode, running stats) into the conv weights.
    # TODO(synk): training-mode BN (batch statistics) is not computed in-kernel.
    scale = (gamma / jnp.sqrt(running_var + eps)).astype(jnp.float32)     # (C,)
    shift = (beta - running_mean * scale).astype(jnp.float32)             # (C,)
    dw_folded = (dw_khwc.astype(jnp.float32) * scale[None, None, :]
                 ).reshape(kernel_size * kernel_size, C)                  # (KH*KW, C)

    # Pad Cout to a lane-dense multiple of 128; pointwise weight in bf16
    # (MXU-native rate), bias stays f32 and is added after the matmul.
    cout_pad = -(-Cout // 128) * 128
    pw_f32 = pw_c_cout.astype(jnp.float32)
    pw_pad = jnp.zeros((C, cout_pad), jnp.float32).at[:, :Cout].set(pw_f32)
    pw_pad = pw_pad.astype(jnp.bfloat16)
    bias_pad = jnp.zeros((1, cout_pad), jnp.float32).at[0, :Cout].set(shift @ pw_f32)

    TH = _pick_tile_h(Ho, Wo)
    n_h_tiles = Ho // TH

    kernel = functools.partial(_sepconv_kernel, kh_size=kernel_size,
                               kw_size=kernel_size, stride=stride,
                               dilation=dilation)

    out_pad = pl.pallas_call(
        kernel,
        out_shape=jax.ShapeDtypeStruct((N, Ho, Wo, cout_pad), jnp.float32),
        grid_spec=pltpu.PrefetchScalarGridSpec(
            num_scalar_prefetch=0,
            grid=(N, n_h_tiles),
            in_specs=[
                # Padded input: block index constant along h -> DMA'd once per n.
                pl.BlockSpec((1, Hp, Wp, C), lambda n, h: (n, 0, 0, 0)),
                pl.BlockSpec((kernel_size * kernel_size, C), lambda n, h: (0, 0)),
                pl.BlockSpec((C, cout_pad), lambda n, h: (0, 0)),
                pl.BlockSpec((1, cout_pad), lambda n, h: (0, 0)),
            ],
            out_specs=pl.BlockSpec((1, TH, Wo, cout_pad),
                                   lambda n, h: (n, h, 0, 0)),
            scratch_shapes=[pltpu.VMEM((TH, Wo, C), jnp.float32)],
        ),
        compiler_params=pltpu.CompilerParams(
            dimension_semantics=("parallel", "parallel")),
    )(x_pad, dw_folded, pw_pad, bias_pad)

    # Drop channel padding, NHWC -> NCHW.
    return jnp.transpose(out_pad[..., :Cout], (0, 3, 1, 2))


def _reference(x_nchw, dw_khwc, gamma, beta, running_mean, running_var,
               pw_c_cout, *, kernel_size=3, stride=1, dilation=1, eps=1e-5):
    """Pure-JAX f32 reference matching the PyTorch forward (BN in eval mode)."""
    pad = dilation * (kernel_size - 1)
    pad_beg = pad // 2
    pad_end = pad - pad_beg
    C = x_nchw.shape[1]
    xp = jnp.pad(x_nchw, ((0, 0), (0, 0), (pad_beg, pad_end),
                          (pad_beg, pad_end)))
    dw_oihw = jnp.transpose(dw_khwc, (2, 0, 1))[:, None, :, :]    # (C,1,KH,KW)
    y = jax.lax.conv_general_dilated(
        xp, dw_oihw, (stride, stride), 'VALID',
        rhs_dilation=(dilation, dilation), feature_group_count=C,
        dimension_numbers=('NCHW', 'OIHW', 'NCHW'))
    scale = gamma / jnp.sqrt(running_var + eps)
    shift = beta - running_mean * scale
    y = y * scale[None, :, None, None] + shift[None, :, None, None]
    pw_oihw = pw_c_cout.T[:, :, None, None]                       # (Cout,C,1,1)
    z = jax.lax.conv_general_dilated(
        y, pw_oihw, (1, 1), 'VALID',
        dimension_numbers=('NCHW', 'OIHW', 'NCHW'))
    return z


if __name__ == "__main__":
    # SeparableConv2d(inChannel=4, outChannel=8, kernelSize=3, ...)
    N, C_IN, H, W = 2, 4, 16, 16
    C_OUT, K = 8, 3

    key = jax.random.PRNGKey(0)
    kx, kdw, kpw, kg, kb, km, kv = jax.random.split(key, 7)

    x = jax.random.normal(kx, (N, C_IN, H, W), jnp.float32)
    # Depthwise weight: PyTorch (C_IN, 1, K, K) -> ours (K, K, C_IN)
    dw = jax.random.normal(kdw, (K, K, C_IN), jnp.float32) * 0.1
    # Pointwise weight: PyTorch (C_OUT, C_IN, 1, 1) -> ours (C_IN, C_OUT)
    pw = jax.random.normal(kpw, (C_IN, C_OUT), jnp.float32) * 0.1
    # BatchNorm parameters (inference mode with running statistics).
    gamma = 1.0 + 0.1 * jax.random.normal(kg, (C_IN,), jnp.float32)
    beta = 0.1 * jax.random.normal(kb, (C_IN,), jnp.float32)
    running_mean = 0.1 * jax.random.normal(km, (C_IN,), jnp.float32)
    running_var = 1.0 + 0.1 * jax.random.uniform(kv, (C_IN,), jnp.float32)

    # Two configs: default (stride=1, dil=1) and dilated (stride=1, dil=2);
    # both produce Ho=16 so the row-tiled (TH=8) grid path is exercised.
    for (stride, dil) in ((1, 1), (1, 2)):
        out = separable_conv2d(x, dw, gamma, beta, running_mean, running_var,
                               pw, kernel_size=K, stride=stride, dilation=dil)
        out = jax.block_until_ready(out)

        ref = _reference(x, dw, gamma, beta, running_mean, running_var, pw,
                         kernel_size=K, stride=stride, dilation=dil)
        ref = jax.block_until_ready(ref)

        assert out.shape == ref.shape, (out.shape, ref.shape)
        # Tolerance relaxed vs pure-f32: the pointwise matmul uses bf16
        # operands (f32 accumulation), per the perf review.
        err = float(jnp.max(jnp.abs(out - ref)))
        assert jnp.allclose(out, ref, rtol=1e-2, atol=1e-2), (stride, dil, err)

    print("KERNEL_OK")
</pallas_src>

<mosaic_0001>
module attributes {stable_mosaic.version = 11 : i64} {
  func.func @_sepconv_kernel(%arg0: i32, %arg1: i32, %arg2: memref<1x18x18x4xf32, #tpu.memory_space<vmem>>, %arg3: memref<9x4xf32, #tpu.memory_space<vmem>>, %arg4: memref<4x128xbf16, #tpu.memory_space<vmem>>, %arg5: memref<1x128xf32, #tpu.memory_space<vmem>>, %arg6: memref<1x8x16x128xf32, #tpu.memory_space<vmem>>, %arg7: memref<8x16x4xf32, #tpu.memory_space<vmem>>) attributes {dimension_semantics = [#tpu.dimension_semantics<parallel>, #tpu.dimension_semantics<parallel>], iteration_bounds = array<i64: 2, 2>, scalar_prefetch = 0 : i64, scratch_operands = 1 : i64, tpu.core_type = #tpu.core_type<tc>, window_params = [{transform_indices = @transform_0, window_bounds = array<i64: 1, 18, 18, 4>}, {pipeline_mode = #tpu.pipeline_mode<synchronous>, transform_indices = @transform_1, window_bounds = array<i64: 9, 4>}, {pipeline_mode = #tpu.pipeline_mode<synchronous>, transform_indices = @transform_2, window_bounds = array<i64: 4, 128>}, {pipeline_mode = #tpu.pipeline_mode<synchronous>, transform_indices = @transform_3, window_bounds = array<i64: 1, 128>}, {transform_indices = @transform_4, window_bounds = array<i64: 1, 8, 16, 128>}]} {
    %c8_i32 = arith.constant 8 : i32
    %0 = arith.muli %arg1, %c8_i32 : i32
    %1 = tpu.assume_multiple %0, 8 : i32
    %c0 = arith.constant 0 : index
    %c0_0 = arith.constant 0 : index
    %2 = vector.load %arg3[%c0, %c0_0] : memref<9x4xf32, #tpu.memory_space<vmem>>, vector<9x4xf32>
    %c0_i32 = arith.constant 0 : i32
    %3 = arith.addi %1, %c0_i32 : i32
    %c0_1 = arith.constant 0 : index
    %4 = arith.index_cast %3 : i32 to index
    %c0_2 = arith.constant 0 : index
    %c0_3 = arith.constant 0 : index
    %5 = vector.load %arg2[%c0_1, %4, %c0_2, %c0_3] : memref<1x18x18x4xf32, #tpu.memory_space<vmem>>, vector<1x8x16x4xf32>
    %6 = vector.shape_cast %5 : vector<1x8x16x4xf32> to vector<8x16x4xf32>
    %7 = vector.extract_strided_slice %2 {offsets = [0, 0], sizes = [1, 4], strides = [1, 1]} : vector<9x4xf32> to vector<1x4xf32>
    %8 = vector.shape_cast %7 : vector<1x4xf32> to vector<4xf32>
    %9 = vector.shape_cast %8 : vector<4xf32> to vector<1x1x4xf32>
    %10 = vector.broadcast %9 : vector<1x1x4xf32> to vector<8x16x4xf32>
    %11 = arith.mulf %6, %10 : vector<8x16x4xf32>
    %c0_4 = arith.constant 0 : index
    %c0_5 = arith.constant 0 : index
    %c0_6 = arith.constant 0 : index
    %12 = vector.load %arg7[%c0_4, %c0_5, %c0_6] : memref<8x16x4xf32, #tpu.memory_space<vmem>>, vector<8x16x4xf32>
    tpu.vector_store %arg7[%c0_4, %c0_5, %c0_6], %11 {strides = array<i32>} : memref<8x16x4xf32, #tpu.memory_space<vmem>>, vector<8x16x4xf32>,
    %c0_i32_7 = arith.constant 0 : i32
    %13 = arith.addi %1, %c0_i32_7 : i32
    %c0_8 = arith.constant 0 : index
    %14 = arith.index_cast %13 : i32 to index
    %c1 = arith.constant 1 : index
    %c0_9 = arith.constant 0 : index
    %15 = vector.load %arg2[%c0_8, %14, %c1, %c0_9] : memref<1x18x18x4xf32, #tpu.memory_space<vmem>>, vector<1x8x16x4xf32>
    %16 = vector.shape_cast %15 : vector<1x8x16x4xf32> to vector<8x16x4xf32>
    %17 = vector.extract_strided_slice %2 {offsets = [1, 0], sizes = [1, 4], strides = [1, 1]} : vector<9x4xf32> to vector<1x4xf32>
    %18 = vector.shape_cast %17 : vector<1x4xf32> to vector<4xf32>
    %19 = vector.shape_cast %18 : vector<4xf32> to vector<1x1x4xf32>
    %20 = vector.broadcast %19 : vector<1x1x4xf32> to vector<8x16x4xf32>
    %21 = arith.mulf %16, %20 : vector<8x16x4xf32>
    %c0_10 = arith.constant 0 : index
    %c0_11 = arith.constant 0 : index
    %c0_12 = arith.constant 0 : index
    %22 = vector.load %arg7[%c0_10, %c0_11, %c0_12] : memref<8x16x4xf32, #tpu.memory_space<vmem>>, vector<8x16x4xf32>
    %23 = arith.addf %22, %21 : vector<8x16x4xf32>
    %c0_13 = arith.constant 0 : index
    %c0_14 = arith.constant 0 : index
    %c0_15 = arith.constant 0 : index
    %24 = vector.load %arg7[%c0_13, %c0_14, %c0_15] : memref<8x16x4xf32, #tpu.memory_space<vmem>>, vector<8x16x4xf32>
    tpu.vector_store %arg7[%c0_13, %c0_14, %c0_15], %23 {strides = array<i32>} : memref<8x16x4xf32, #tpu.memory_space<vmem>>, vector<8x16x4xf32>,
    %c0_i32_16 = arith.constant 0 : i32
    %25 = arith.addi %1, %c0_i32_16 : i32
    %c0_17 = arith.constant 0 : index
    %26 = arith.index_cast %25 : i32 to index
    %c2 = arith.constant 2 : index
    %c0_18 = arith.constant 0 : index
    %27 = vector.load %arg2[%c0_17, %26, %c2, %c0_18] : memref<1x18x18x4xf32, #tpu.memory_space<vmem>>, vector<1x8x16x4xf32>
    %28 = vector.shape_cast %27 : vector<1x8x16x4xf32> to vector<8x16x4xf32>
    %29 = vector.extract_strided_slice %2 {offsets = [2, 0], sizes = [1, 4], strides = [1, 1]} : vector<9x4xf32> to vector<1x4xf32>
    %30 = vector.shape_cast %29 : vector<1x4xf32> to vector<4xf32>
    %31 = vector.shape_cast %30 : vector<4xf32> to vector<1x1x4xf32>
    %32 = vector.broadcast %31 : vector<1x1x4xf32> to vector<8x16x4xf32>
    %33 = arith.mulf %28, %32 : vector<8x16x4xf32>
    %c0_19 = arith.constant 0 : index
    %c0_20 = arith.constant 0 : index
    %c0_21 = arith.constant 0 : index
    %34 = vector.load %arg7[%c0_19, %c0_20, %c0_21] : memref<8x16x4xf32, #tpu.memory_space<vmem>>, vector<8x16x4xf32>
    %35 = arith.addf %34, %33 : vector<8x16x4xf32>
    %c0_22 = arith.constant 0 : index
    %c0_23 = arith.constant 0 : index
    %c0_24 = arith.constant 0 : index
    %36 = vector.load %arg7[%c0_22, %c0_23, %c0_24] : memref<8x16x4xf32, #tpu.memory_space<vmem>>, vector<8x16x4xf32>
    tpu.vector_store %arg7[%c0_22, %c0_23, %c0_24], %35 {strides = array<i32>} : memref<8x16x4xf32, #tpu.memory_space<vmem>>, vector<8x16x4xf32>,
    %c1_i32 = arith.constant 1 : i32
    %37 = arith.addi %1, %c1_i32 : i32
    %c0_25 = arith.constant 0 : index
    %38 = arith.index_cast %37 : i32 to index
    %c0_26 = arith.constant 0 : index
    %c0_27 = arith.constant 0 : index
    %39 = vector.load %arg2[%c0_25, %38, %c0_26, %c0_27] : memref<1x18x18x4xf32, #tpu.memory_space<vmem>>, vector<1x8x16x4xf32>
    %40 = vector.shape_cast %39 : vector<1x8x16x4xf32> to vector<8x16x4xf32>
    %41 = vector.extract_strided_slice %2 {offsets = [3, 0], sizes = [1, 4], strides = [1, 1]} : vector<9x4xf32> to vector<1x4xf32>
    %42 = vector.shape_cast %41 : vector<1x4xf32> to vector<4xf32>
    %43 = vector.shape_cast %42 : vector<4xf32> to vector<1x1x4xf32>
    %44 = vector.broadcast %43 : vector<1x1x4xf32> to vector<8x16x4xf32>
    %45 = arith.mulf %40, %44 : vector<8x16x4xf32>
    %c0_28 = arith.constant 0 : index
    %c0_29 = arith.constant 0 : index
    %c0_30 = arith.constant 0 : index
    %46 = vector.load %arg7[%c0_28, %c0_29, %c0_30] : memref<8x16x4xf32, #tpu.memory_space<vmem>>, vector<8x16x4xf32>
    %47 = arith.addf %46, %45 : vector<8x16x4xf32>
    %c0_31 = arith.constant 0 : index
    %c0_32 = arith.constant 0 : index
    %c0_33 = arith.constant 0 : index
    %48 = vector.load %arg7[%c0_31, %c0_32, %c0_33] : memref<8x16x4xf32, #tpu.memory_space<vmem>>, vector<8x16x4xf32>
    tpu.vector_store %arg7[%c0_31, %c0_32, %c0_33], %47 {strides = array<i32>} : memref<8x16x4xf32, #tpu.memory_space<vmem>>, vector<8x16x4xf32>,
    %c1_i32_34 = arith.constant 1 : i32
    %49 = arith.addi %1, %c1_i32_34 : i32
    %c0_35 = arith.constant 0 : index
    %50 = arith.index_cast %49 : i32 to index
    %c1_36 = arith.constant 1 : index
    %c0_37 = arith.constant 0 : index
    %51 = vector.load %arg2[%c0_35, %50, %c1_36, %c0_37] : memref<1x18x18x4xf32, #tpu.memory_space<vmem>>, vector<1x8x16x4xf32>
    %52 = vector.shape_cast %51 : vector<1x8x16x4xf32> to vector<8x16x4xf32>
    %53 = vector.extract_strided_slice %2 {offsets = [4, 0], sizes = [1, 4], strides = [1, 1]} : vector<9x4xf32> to vector<1x4xf32>
    %54 = vector.shape_cast %53 : vector<1x4xf32> to vector<4xf32>
    %55 = vector.shape_cast %54 : vector<4xf32> to vector<1x1x4xf32>
    %56 = vector.broadcast %55 : vector<1x1x4xf32> to vector<8x16x4xf32>
    %57 = arith.mulf %52, %56 : vector<8x16x4xf32>
    %c0_38 = arith.constant 0 : index
    %c0_39 = arith.constant 0 : index
    %c0_40 = arith.constant 0 : index
    %58 = vector.load %arg7[%c0_38, %c0_39, %c0_40] : memref<8x16x4xf32, #tpu.memory_space<vmem>>, vector<8x16x4xf32>
    %59 = arith.addf %58, %57 : vector<8x16x4xf32>
    %c0_41 = arith.constant 0 : index
    %c0_42 = arith.constant 0 : index
    %c0_43 = arith.constant 0 : index
    %60 = vector.load %arg7[%c0_41, %c0_42, %c0_43] : memref<8x16x4xf32, #tpu.memory_space<vmem>>, vector<8x16x4xf32>
    tpu.vector_store %arg7[%c0_41, %c0_42, %c0_43], %59 {strides = array<i32>} : memref<8x16x4xf32, #tpu.memory_space<vmem>>, vector<8x16x4xf32>,
    %c1_i32_44 = arith.constant 1 : i32
    %61 = arith.addi %1, %c1_i32_44 : i32
    %c0_45 = arith.constant 0 : index
    %62 = arith.index_cast %61 : i32 to index
    %c2_46 = arith.constant 2 : index
    %c0_47 = arith.constant 0 : index
    %63 = vector.load %arg2[%c0_45, %62, %c2_46, %c0_47] : memref<1x18x18x4xf32, #tpu.memory_space<vmem>>, vector<1x8x16x4xf32>
    %64 = vector.shape_cast %63 : vector<1x8x16x4xf32> to vector<8x16x4xf32>
    %65 = vector.extract_strided_slice %2 {offsets = [5, 0], sizes = [1, 4], strides = [1, 1]} : vector<9x4xf32> to vector<1x4xf32>
    %66 = vector.shape_cast %65 : vector<1x4xf32> to vector<4xf32>
    %67 = vector.shape_cast %66 : vector<4xf32> to vector<1x1x4xf32>
    %68 = vector.broadcast %67 : vector<1x1x4xf32> to vector<8x16x4xf32>
    %69 = arith.mulf %64, %68 : vector<8x16x4xf32>
    %c0_48 = arith.constant 0 : index
    %c0_49 = arith.constant 0 : index
    %c0_50 = arith.constant 0 : index
    %70 = vector.load %arg7[%c0_48, %c0_49, %c0_50] : memref<8x16x4xf32, #tpu.memory_space<vmem>>, vector<8x16x4xf32>
    %71 = arith.addf %70, %69 : vector<8x16x4xf32>
    %c0_51 = arith.constant 0 : index
    %c0_52 = arith.constant 0 : index
    %c0_53 = arith.constant 0 : index
    %72 = vector.load %arg7[%c0_51, %c0_52, %c0_53] : memref<8x16x4xf32, #tpu.memory_space<vmem>>, vector<8x16x4xf32>
    tpu.vector_store %arg7[%c0_51, %c0_52, %c0_53], %71 {strides = array<i32>} : memref<8x16x4xf32, #tpu.memory_space<vmem>>, vector<8x16x4xf32>,
    %c2_i32 = arith.constant 2 : i32
    %73 = arith.addi %1, %c2_i32 : i32
    %c0_54 = arith.constant 0 : index
    %74 = arith.index_cast %73 : i32 to index
    %c0_55 = arith.constant 0 : index
    %c0_56 = arith.constant 0 : index
    %75 = vector.load %arg2[%c0_54, %74, %c0_55, %c0_56] : memref<1x18x18x4xf32, #tpu.memory_space<vmem>>, vector<1x8x16x4xf32>
    %76 = vector.shape_cast %75 : vector<1x8x16x4xf32> to vector<8x16x4xf32>
    %77 = vector.extract_strided_slice %2 {offsets = [6, 0], sizes = [1, 4], strides = [1, 1]} : vector<9x4xf32> to vector<1x4xf32>
    %78 = vector.shape_cast %77 : vector<1x4xf32> to vector<4xf32>
    %79 = vector.shape_cast %78 : vector<4xf32> to vector<1x1x4xf32>
    %80 = vector.broadcast %79 : vector<1x1x4xf32> to vector<8x16x4xf32>
    %81 = arith.mulf %76, %80 : vector<8x16x4xf32>
    %c0_57 = arith.constant 0 : index
    %c0_58 = arith.constant 0 : index
    %c0_59 = arith.constant 0 : index
    %82 = vector.load %arg7[%c0_57, %c0_58, %c0_59] : memref<8x16x4xf32, #tpu.memory_space<vmem>>, vector<8x16x4xf32>
    %83 = arith.addf %82, %81 : vector<8x16x4xf32>
    %c0_60 = arith.constant 0 : index
    %c0_61 = arith.constant 0 : index
    %c0_62 = arith.constant 0 : index
    %84 = vector.load %arg7[%c0_60, %c0_61, %c0_62] : memref<8x16x4xf32, #tpu.memory_space<vmem>>, vector<8x16x4xf32>
    tpu.vector_store %arg7[%c0_60, %c0_61, %c0_62], %83 {strides = array<i32>} : memref<8x16x4xf32, #tpu.memory_space<vmem>>, vector<8x16x4xf32>,
    %c2_i32_63 = arith.constant 2 : i32
    %85 = arith.addi %1, %c2_i32_63 : i32
    %c0_64 = arith.constant 0 : index
    %86 = arith.index_cast %85 : i32 to index
    %c1_65 = arith.constant 1 : index
    %c0_66 = arith.constant 0 : index
    %87 = vector.load %arg2[%c0_64, %86, %c1_65, %c0_66] : memref<1x18x18x4xf32, #tpu.memory_space<vmem>>, vector<1x8x16x4xf32>
    %88 = vector.shape_cast %87 : vector<1x8x16x4xf32> to vector<8x16x4xf32>
    %89 = vector.extract_strided_slice %2 {offsets = [7, 0], sizes = [1, 4], strides = [1, 1]} : vector<9x4xf32> to vector<1x4xf32>
    %90 = vector.shape_cast %89 : vector<1x4xf32> to vector<4xf32>
    %91 = vector.shape_cast %90 : vector<4xf32> to vector<1x1x4xf32>
    %92 = vector.broadcast %91 : vector<1x1x4xf32> to vector<8x16x4xf32>
    %93 = arith.mulf %88, %92 : vector<8x16x4xf32>
    %c0_67 = arith.constant 0 : index
    %c0_68 = arith.constant 0 : index
    %c0_69 = arith.constant 0 : index
    %94 = vector.load %arg7[%c0_67, %c0_68, %c0_69] : memref<8x16x4xf32, #tpu.memory_space<vmem>>, vector<8x16x4xf32>
    %95 = arith.addf %94, %93 : vector<8x16x4xf32>
    %c0_70 = arith.constant 0 : index
    %c0_71 = arith.constant 0 : index
    %c0_72 = arith.constant 0 : index
    %96 = vector.load %arg7[%c0_70, %c0_71, %c0_72] : memref<8x16x4xf32, #tpu.memory_space<vmem>>, vector<8x16x4xf32>
    tpu.vector_store %arg7[%c0_70, %c0_71, %c0_72], %95 {strides = array<i32>} : memref<8x16x4xf32, #tpu.memory_space<vmem>>, vector<8x16x4xf32>,
    %c2_i32_73 = arith.constant 2 : i32
    %97 = arith.addi %1, %c2_i32_73 : i32
    %c0_74 = arith.constant 0 : index
    %98 = arith.index_cast %97 : i32 to index
    %c2_75 = arith.constant 2 : index
    %c0_76 = arith.constant 0 : index
    %99 = vector.load %arg2[%c0_74, %98, %c2_75, %c0_76] : memref<1x18x18x4xf32, #tpu.memory_space<vmem>>, vector<1x8x16x4xf32>
    %100 = vector.shape_cast %99 : vector<1x8x16x4xf32> to vector<8x16x4xf32>
    %101 = vector.extract_strided_slice %2 {offsets = [8, 0], sizes = [1, 4], strides = [1, 1]} : vector<9x4xf32> to vector<1x4xf32>
    %102 = vector.shape_cast %101 : vector<1x4xf32> to vector<4xf32>
    %103 = vector.shape_cast %102 : vector<4xf32> to vector<1x1x4xf32>
    %104 = vector.broadcast %103 : vector<1x1x4xf32> to vector<8x16x4xf32>
    %105 = arith.mulf %100, %104 : vector<8x16x4xf32>
    %c0_77 = arith.constant 0 : index
    %c0_78 = arith.constant 0 : index
    %c0_79 = arith.constant 0 : index
    %106 = vector.load %arg7[%c0_77, %c0_78, %c0_79] : memref<8x16x4xf32, #tpu.memory_space<vmem>>, vector<8x16x4xf32>
    %107 = arith.addf %106, %105 : vector<8x16x4xf32>
    %c0_80 = arith.constant 0 : index
    %c0_81 = arith.constant 0 : index
    %c0_82 = arith.constant 0 : index
    %108 = vector.load %arg7[%c0_80, %c0_81, %c0_82] : memref<8x16x4xf32, #tpu.memory_space<vmem>>, vector<8x16x4xf32>
    tpu.vector_store %arg7[%c0_80, %c0_81, %c0_82], %107 {strides = array<i32>} : memref<8x16x4xf32, #tpu.memory_space<vmem>>, vector<8x16x4xf32>,
    %c0_83 = arith.constant 0 : index
    %c0_84 = arith.constant 0 : index
    %c0_85 = arith.constant 0 : index
    %109 = vector.load %arg7[%c0_83, %c0_84, %c0_85] : memref<8x16x4xf32, #tpu.memory_space<vmem>>, vector<8x16x4xf32>
    %110 = vector.shape_cast %109 : vector<8x16x4xf32> to vector<128x4xf32>
    %111 = arith.truncf %110 : vector<128x4xf32> to vector<128x4xbf16>
    %c0_86 = arith.constant 0 : index
    %c0_87 = arith.constant 0 : index
    %112 = vector.load %arg4[%c0_86, %c0_87] : memref<4x128xbf16, #tpu.memory_space<vmem>>, vector<4x128xbf16>
    %cst = arith.constant dense<0.000000e+00> : vector<128x128xf32>
    %113 = tpu.matmul %111, %112, %cst {dimension_numbers = #tpu.dot_dimension_numbers<[1], [0], [0], [1], [0, 0, 1, 1], [], []>} : vector<128x4xbf16>, vector<4x128xbf16>, vector<128x128xf32> -> vector<128x128xf32>
    %c0_88 = arith.constant 0 : index
    %c0_89 = arith.constant 0 : index
    %114 = vector.load %arg5[%c0_88, %c0_89] : memref<1x128xf32, #tpu.memory_space<vmem>>, vector<1x128xf32>
    %115 = vector.broadcast %114 : vector<1x128xf32> to vector<128x128xf32>
    %116 = arith.addf %113, %115 : vector<128x128xf32>
    %117 = vector.shape_cast %116 : vector<128x128xf32> to vector<8x16x128xf32>
    %c0_90 = arith.constant 0 : index
    %c0_91 = arith.constant 0 : index
    %c0_92 = arith.constant 0 : index
    %c0_93 = arith.constant 0 : index
    %118 = vector.load %arg6[%c0_90, %c0_91, %c0_92, %c0_93] : memref<1x8x16x128xf32, #tpu.memory_space<vmem>>, vector<1x8x16x128xf32>
    %119 = vector.shape_cast %118 : vector<1x8x16x128xf32> to vector<8x16x128xf32>
    %120 = vector.shape_cast %117 : vector<8x16x128xf32> to vector<1x8x16x128xf32>
    tpu.vector_store %arg6[%c0_90, %c0_91, %c0_92, %c0_93], %120 {strides = array<i32>} : memref<1x8x16x128xf32, #tpu.memory_space<vmem>>, vector<1x8x16x128xf32>,
    return
  }
  func.func @transform_0(%arg0: i32, %arg1: i32) -> (i32, i32, i32, i32) {
    %c0_i32 = arith.constant 0 : i32
    %c0_i32_0 = arith.constant 0 : i32
    %c0_i32_1 = arith.constant 0 : i32
    %c0_i32_2 = arith.constant 0 : i32
    return %arg0, %c0_i32, %c0_i32_0, %c0_i32_1 : i32, i32, i32, i32
  }
  func.func @transform_1(%arg0: i32, %arg1: i32) -> (i32, i32) {
    %c0_i32 = arith.constant 0 : i32
    %c0_i32_0 = arith.constant 0 : i32
    %c0_i32_1 = arith.constant 0 : i32
    return %c0_i32, %c0_i32_0 : i32, i32
  }
  func.func @transform_2(%arg0: i32, %arg1: i32) -> (i32, i32) {
    %c0_i32 = arith.constant 0 : i32
    %c0_i32_0 = arith.constant 0 : i32
    %c0_i32_1 = arith.constant 0 : i32
    return %c0_i32, %c0_i32_0 : i32, i32
  }
  func.func @transform_3(%arg0: i32, %arg1: i32) -> (i32, i32) {
    %c0_i32 = arith.constant 0 : i32
    %c0_i32_0 = arith.constant 0 : i32
    %c0_i32_1 = arith.constant 0 : i32
    return %c0_i32, %c0_i32_0 : i32, i32
  }
  func.func @transform_4(%arg0: i32, %arg1: i32) -> (i32, i32, i32, i32) {
    %c0_i32 = arith.constant 0 : i32
    %c0_i32_0 = arith.constant 0 : i32
    %c0_i32_1 = arith.constant 0 : i32
    return %arg0, %arg1, %c0_i32, %c0_i32_0 : i32, i32, i32, i32
  }
}

</mosaic_0001>

<llo_original>
// kernel: tpu_custom_call.1
$region0: #{tpu_custom_call.1}
  #allocation0 [shape = 'u32[]', space=smem, size = 0x4, offset = 0x4, fixed_abs, tag = 'smem constant byte address 0x4 - core index']
  #allocation1 [shape = 'u32[144,128]{1,0:T(1,128)}', space=vmem, size = 0x12000, scoped, tag = 'internal scratch']
  #allocation2 [shape = 'f32[8,16,4]{2,1,0:T(8,128)}', space=vmem, size = 0x10000, scoped, tag = 'scratch operand']
  %s0 = inlined_call_operand.vmem [shape: f32[2,18,18,4], index: 0, kind: input, shape index: {}]
  %s1 = inlined_call_operand.vmem [shape: f32[9,4], index: 1, kind: input, shape index: {}]
  %s2 = inlined_call_operand.vmem [shape: bf16[4,128], index: 2, kind: input, shape index: {}]
  %s3 = inlined_call_operand.vmem [shape: f32[1,128], index: 3, kind: input, shape index: {}]
  %s4 = inlined_call_operand.hbm [shape: f32[2,16,16,128], index: 4, kind: output, shape index: {}]
  %s5 = sld [smem:[#allocation0]]
  $region49: #{tpu_custom_call.1} parent=0
    _
  %s7 = ssub.s32 1, %s5
  %s8 = scalar_select 0, %s7, %s5
  $region1: #{tpu_custom_call.1} parent=0
    #allocation3 [shape = 'u8[131072]{0}', space=vmem, size = 0x20000, scoped, tag = 'output window, operand 0']
    #allocation4 [shape = 's32[2]{0}', space=sflag, size = 0x8, scoped, tag = 'scoped memory for tpu_custom_call.1']
    %9 = vsyncpa [#allocation4], 0
    %s10 = scalar_lea.sflag [#allocation4], 1
    %11 = vsyncpa %s10, 0
    loop: start=0, step=1, limit=6
    $region2: #{tpu_custom_call.1} parent=1 // loop_pre_header
      _
    $region3: #{tpu_custom_call.1} parent=1 // loop_header
      %s13 = sphi 0, %s17
      %p14 = scmp.ge.s32.totalorder %s13, 6
      %s20 = sphi 0, %s32
      %s21 = sphi 0, %s28
      %s22 = sphi 0, %s20
      %s23 = sphi 0, %s21
      %s24 = sphi 0, %s22
      %s25 = sphi 0, %s23
      %s35 = sphi 0, %s37
      %s38 = sphi 0, %s35
      %s39 = sphi 0, %s38
      %s55 = sphi 0, %s39
      %s59 = sphi 0, %s59
      %s61 = sphi 0, %s59
      %s62 = sphi 0, %s61
      %s76 = sphi 0, %s62
      %s80 = sphi 0, %s80
      %s82 = sphi 0, %s80
      %s83 = sphi 0, %s82
      %s97 = sphi 0, %s83
      %s101 = sphi 0, %s101
      %s103 = sphi 0, %s101
      %s104 = sphi 0, %s103
      %s118 = sphi 0, %s104
      %s126 = sphi 0, %s128
      %s129 = sphi 0, %s126
      %s130 = sphi 0, %s129
      %s146 = sphi 0, %s130
    $region4: #{tpu_custom_call.1} parent=1 // loop_header_branch
      %16 = sbr.rel (%p14) target = $region8
    $region5: #{tpu_custom_call.1} parent=1 // loop_body
      %s18 = ssub.s32 %s13, 1
      %s19 = ssub.s32 %s13, 2
      %s26 = sadd.s32 1, %s21
      %p27 = scmp.ge.s32.totalorder %s26, 2
      %s28 = scalar_select %p27, 0, %s26
      %s29 = sadd.s32 1, %s20
      %s30 = scalar_select %p27, %s29, %s20
      %p31 = scmp.ge.s32.totalorder %s30, 2
      %s32 = scalar_select %p31, 0, %s30
      %s33 = ssub.s32 %s20, %s32
      %p34 = scmp.eq.s32.totalorder %s33, 0
      %s36 = sadd.s32 %s35, 1
      %s37 = scalar_select %p34, %s35, %s36
      %p40 = pneg %p34
      %p41 = scmp.eq.s32.totalorder %s13, 3
      %p42 = por %p40, %p41
      %p43 = scmp.ne.s32.totalorder %s35, %s38
      %p44 = scmp.eq.s32.totalorder %s13, 0
      %p45 = por %p43, %p44
      %p46 = scmp.ne.s32.totalorder %s35, %s38
      %p47 = scmp.eq.s32.totalorder %s18, 3
      %p48 = por %p46, %p47
      %p49 = scmp.ne.s32.totalorder %s38, %s39
      %p50 = scmp.eq.s32.totalorder %s18, 0
      %p51 = por %p49, %p50
      %p52 = scmp.ne.s32.totalorder %s38, %s39
      %p53 = scmp.eq.s32.totalorder %s19, 3
      %p54 = por %p52, %p53
      %p56 = scmp.ne.s32.totalorder %s39, %s55
      %p57 = scmp.eq.s32.totalorder %s19, 0
      %p58 = por %p56, %p57
      %s60 = sadd.s32 %s59, 1
      %p63 = scmp.eq.s32.totalorder %s13, 3
      %p64 = scmp.ne.s32.totalorder %s59, %s61
      %p65 = scmp.eq.s32.totalorder %s13, 0
      %p66 = por %p64, %p65
      %p67 = scmp.ne.s32.totalorder %s59, %s61
      %p68 = scmp.eq.s32.totalorder %s18, 3
      %p69 = por %p67, %p68
      %p70 = scmp.ne.s32.totalorder %s61, %s62
      %p71 = scmp.eq.s32.totalorder %s18, 0
      %p72 = por %p70, %p71
      %p73 = scmp.ne.s32.totalorder %s61, %s62
      %p74 = scmp.eq.s32.totalorder %s19, 3
      %p75 = por %p73, %p74
      %p77 = scmp.ne.s32.totalorder %s62, %s76
      %p78 = scmp.eq.s32.totalorder %s19, 0
      %p79 = por %p77, %p78
      %s81 = sadd.s32 %s80, 1
      %p84 = scmp.eq.s32.totalorder %s13, 3
      %p85 = scmp.ne.s32.totalorder %s80, %s82
      %p86 = scmp.eq.s32.totalorder %s13, 0
      %p87 = por %p85, %p86
      %p88 = scmp.ne.s32.totalorder %s80, %s82
      %p89 = scmp.eq.s32.totalorder %s18, 3
      %p90 = por %p88, %p89
      %p91 = scmp.ne.s32.totalorder %s82, %s83
      %p92 = scmp.eq.s32.totalorder %s18, 0
      %p93 = por %p91, %p92
      %p94 = scmp.ne.s32.totalorder %s82, %s83
      %p95 = scmp.eq.s32.totalorder %s19, 3
      %p96 = por %p94, %p95
      %p98 = scmp.ne.s32.totalorder %s83, %s97
      %p99 = scmp.eq.s32.totalorder %s19, 0
      %p100 = por %p98, %p99
      %s102 = sadd.s32 %s101, 1
      %p105 = scmp.eq.s32.totalorder %s13, 3
      %p106 = scmp.ne.s32.totalorder %s101, %s103
      %p107 = scmp.eq.s32.totalorder %s13, 0
      %p108 = por %p106, %p107
      %p109 = scmp.ne.s32.totalorder %s101, %s103
      %p110 = scmp.eq.s32.totalorder %s18, 3
      %p111 = por %p109, %p110
      %p112 = scmp.ne.s32.totalorder %s103, %s104
      %p113 = scmp.eq.s32.totalorder %s18, 0
      %p114 = por %p112, %p113
      %p115 = scmp.ne.s32.totalorder %s103, %s104
      %p116 = scmp.eq.s32.totalorder %s19, 3
      %p117 = por %p115, %p116
      %p119 = scmp.ne.s32.totalorder %s104, %s118
      %p120 = scmp.eq.s32.totalorder %s19, 0
      %p121 = por %p119, %p120
      %s122 = ssub.s32 %s20, %s32
      %s123 = ssub.s32 %s21, %s28
      %s124 = sor.u32 %s122, %s123
      %p125 = scmp.eq.s32.totalorder %s124, 0
      %s127 = sadd.s32 %s126, 1
      %s128 = scalar_select %p125, %s126, %s127
      %p131 = pneg %p125
      %p132 = scmp.eq.s32.totalorder %s13, 3
      %p133 = por %p131, %p132
      %p134 = scmp.ne.s32.totalorder %s126, %s129
      %p135 = scmp.eq.s32.totalorder %s13, 0
      %p136 = por %p134, %p135
      %p137 = scmp.ne.s32.totalorder %s126, %s129
      %p138 = scmp.eq.s32.totalorder %s18, 3
      %p139 = por %p137, %p138
      %p140 = scmp.ne.s32.totalorder %s129, %s130
      %p141 = scmp.eq.s32.totalorder %s18, 0
      %p142 = por %p140, %p141
      %p143 = scmp.ne.s32.totalorder %s129, %s130
      %p144 = scmp.eq.s32.totalorder %s19, 3
      %p145 = por %p143, %p144
      %p147 = scmp.ne.s32.totalorder %s130, %s146
      %p148 = scmp.eq.s32.totalorder %s19, 0
      %p149 = por %p147, %p148
      %p150 = scmp.le.s32.totalorder 1, %s13
      %p151 = scmp.lt.s32.totalorder %s13, 5
      %p152 = pnand %p150, %p151
      %p153 = pneg %p152
      // Predicated region
      $region9: #{tpu_custom_call.1} parent=5 // pred_check
        _
      $region10: #{tpu_custom_call.1} parent=5 // pred_check_branch
        %155 = sbr.rel (%p152) target = $region12
      $region11: #{tpu_custom_call.1} parent=5 // pred_region
        %s156 = ssub.s32 %s13, 1
        // Predicated region
        $region13: #{tpu_custom_call.1} parent=11 // pred_check
          %p157 = pneg %p72
        $region14: #{tpu_custom_call.1} parent=11 // pred_check_branch
          %159 = sbr.rel (%p157) target = $region16
        $region15: #{tpu_custom_call.1} parent=11 // pred_region
          _
        $region16: #{tpu_custom_call.1} parent=11 // pred_fallthru
          _
        // Predicated region
        $region17: #{tpu_custom_call.1} parent=11 // pred_check
          %p160 = pneg %p93
        $region18: #{tpu_custom_call.1} parent=11 // pred_check_branch
          %162 = sbr.rel (%p160) target = $region20
        $region19: #{tpu_custom_call.1} parent=11 // pred_region
          _
        $region20: #{tpu_custom_call.1} parent=11 // pred_fallthru
          _
        // Predicated region
        $region21: #{tpu_custom_call.1} parent=11 // pred_check
          %p163 = pneg %p114
        $region22: #{tpu_custom_call.1} parent=11 // pred_check_branch
          %165 = sbr.rel (%p163) target = $region24
        $region23: #{tpu_custom_call.1} parent=11 // pred_region
          _
        $region24: #{tpu_custom_call.1} parent=11 // pred_fallthru
          _
      $region12: #{tpu_custom_call.1} parent=5 // pred_fallthru
        _
      %p166 = scmp.lt.s32.totalorder %s13, 4
      // Predicated region
      $region25: #{tpu_custom_call.1} parent=5 // pred_check
        %p167 = pneg %p166
      $region26: #{tpu_custom_call.1} parent=5 // pred_check_branch
        %169 = sbr.rel (%p167) target = $region28
      $region27: #{tpu_custom_call.1} parent=5 // pred_region
        // Predicated region
        $region29: #{tpu_custom_call.1} parent=27 // pred_check
          %p170 = pneg %p45
        $region30: #{tpu_custom_call.1} parent=27 // pred_check_branch
          %172 = sbr.rel (%p170) target = $region32
        $region31: #{tpu_custom_call.1} parent=27 // pred_region
          %p173 = scmp.lt.s32.totalorder %s20, 1
          %s174 = scalar_select %p173, %s20, 1
          %s175 = smul.addr %s174, 54
          %s176 = smul.addr %s175, 8
          %s177 = scalar_lea.vmem %s0, %s176
        $region32: #{tpu_custom_call.1} parent=27 // pred_fallthru
          _
      $region28: #{tpu_custom_call.1} parent=5 // pred_fallthru
        _
      %p178 = scmp.le.s32.totalorder 1, %s13
      %p179 = scmp.lt.s32.totalorder %s13, 5
      %p180 = pnand %p178, %p179
      %p181 = pneg %p180
      // Predicated region
      $region33: #{tpu_custom_call.1} parent=5 // pred_check
        _
      $region34: #{tpu_custom_call.1} parent=5 // pred_check_branch
        %183 = sbr.rel (%p180) target = $region36
      $region35: #{tpu_custom_call.1} parent=5 // pred_region
        %s184 = ssub.s32 %s13, 1
        %p185 = scmp.lt.s32.totalorder %s22, 1
        %s186 = scalar_select %p185, %s22, 1
        %s187 = smul.addr %s186, 54
        %s188 = smul.addr %s187, 8
        %s189 = scalar_lea.vmem %s0, %s188
        %p190 = pneg %p51
        %p191 = pneg %p48
        %p192 = pneg %p72
        %p193 = pneg %p69
        %p194 = pneg %p93
        %p195 = pneg %p90
        %p196 = pneg %p114
        %p197 = pneg %p111
        %p198 = pneg %p142
        %p199 = pneg %p139
        %s200 = sand.u32 %s129, 1
        %s201 = scalar_lea.sflag [#allocation4], %s200
        %s202 = sand.u32 %s129, 1
        %s203 = smul.addr %s202, 128
        %s204 = scalar_lea.vmem [#allocation3], %s203
        %p205 = scmp.lt.s32.totalorder %s22, 1
        %s206 = scalar_select %p205, %s22, 1
        %s207 = smul.addr %s206, 54
        %s208 = smul.addr %s207, 8
        %s209 = scalar_lea.vmem %s0, %s208
        %s210 = smul.u32 8, %s23
        %s212 = smul.u32 %s23, 8
        %v213 = vld [vmem:[%s1] sm:$0xff]
        %v214 = vld [vmem:[%s1 + $0x8] sm:$0x1]
        %s215 = smul.u32 %s212, 24
        %s216 = scalar_lea.vmem %s209, %s215
        %v217 = vld [vmem:[%s216] sm:$0xff]
        %v218 = vld [vmem:[%s216 + $0x8] sm:$0xff]
        %v219 = vld [vmem:[%s216 + $0x18] sm:$0xff]
        %v220 = vld [vmem:[%s216 + $0x20] sm:$0xff]
        %v221 = vld [vmem:[%s216 + $0x30] sm:$0xff]
        %v222 = vld [vmem:[%s216 + $0x38] sm:$0xff]
        %v223 = vld [vmem:[%s216 + $0x48] sm:$0xff]
        %v224 = vld [vmem:[%s216 + $0x50] sm:$0xff]
        %v225 = vld [vmem:[%s216 + $0x60] sm:$0xff]
        %v226 = vld [vmem:[%s216 + $0x68] sm:$0xff]
        %v227 = vld [vmem:[%s216 + $0x78] sm:$0xff]
        %v228 = vld [vmem:[%s216 + $0x80] sm:$0xff]
        %v229 = vld [vmem:[%s216 + $0x90] sm:$0xff]
        %v230 = vld [vmem:[%s216 + $0x98] sm:$0xff]
        %v231 = vld [vmem:[%s216 + $0xa8] sm:$0xff]
        %v232 = vld [vmem:[%s216 + $0xb0] sm:$0xff]
        %v233 = vlaneseq
        %v234 = vshrl.u32 %v233, 7
        %v235 = vsub.s32 0, %v234
        %v236 = vrot.slane %v213, %v235
        %v237 = vmul.f32 %v217, %v236
        %v238 = vmul.f32 %v218, %v236
        %v239 = vmul.f32 %v219, %v236
        %v240 = vmul.f32 %v220, %v236
        %v241 = vmul.f32 %v221, %v236
        %v242 = vmul.f32 %v222, %v236
        %v243 = vmul.f32 %v223, %v236
        %v244 = vmul.f32 %v224, %v236
        %v245 = vmul.f32 %v225, %v236
        %v246 = vmul.f32 %v226, %v236
        %v247 = vmul.f32 %v227, %v236
        %v248 = vmul.f32 %v228, %v236
        %v249 = vmul.f32 %v229, %v236
        %v250 = vmul.f32 %v230, %v236
        %v251 = vmul.f32 %v231, %v236
        %v252 = vmul.f32 %v232, %v236
        %vm253 = vcmask 31744
        %254 = vst.msk [vmem:[#allocation2] sm:$0xff] %vm253, %v237
        %255 = vst.msk [vmem:[#allocation2 + $0x8] sm:$0xff] %vm253, %v238
        %256 = vst.msk [vmem:[#allocation2 + $0x10] sm:$0xff] %vm253, %v239
        %257 = vst.msk [vmem:[#allocation2 + $0x18] sm:$0xff] %vm253, %v240
        %258 = vst.msk [vmem:[#allocation2 + $0x20] sm:$0xff] %vm253, %v241
        %259 = vst.msk [vmem:[#allocation2 + $0x28] sm:$0xff] %vm253, %v242
        %260 = vst.msk [vmem:[#allocation2 + $0x30] sm:$0xff] %vm253, %v243
        %261 = vst.msk [vmem:[#allocation2 + $0x38] sm:$0xff] %vm253, %v244
        %262 = vst.msk [vmem:[#allocation2 + $0x40] sm:$0xff] %vm253, %v245
        %263 = vst.msk [vmem:[#allocation2 + $0x48] sm:$0xff] %vm253, %v246
        %264 = vst.msk [vmem:[#allocation2 + $0x50] sm:$0xff] %vm253, %v247
        %265 = vst.msk [vmem:[#allocation2 + $0x58] sm:$0xff] %vm253, %v248
        %266 = vst.msk [vmem:[#allocation2 + $0x60] sm:$0xff] %vm253, %v249
        %267 = vst.msk [vmem:[#allocation2 + $0x68] sm:$0xff] %vm253, %v250
        %268 = vst.msk [vmem:[#allocation2 + $0x70] sm:$0xff] %vm253, %v251
        %269 = vst.msk [vmem:[#allocation2 + $0x78] sm:$0xff] %vm253, %v252
        %v270 = vld [vmem:[%s216 + $0x1] sm:$0xff]
        %v271 = vld [vmem:[%s216 + $0x9] sm:$0xff]
        %v272 = vld [vmem:[%s216 + $0x19] sm:$0xff]
        %v273 = vld [vmem:[%s216 + $0x21] sm:$0xff]
        %v274 = vld [vmem:[%s216 + $0x31] sm:$0xff]
        %v275 = vld [vmem:[%s216 + $0x39] sm:$0xff]
        %v276 = vld [vmem:[%s216 + $0x49] sm:$0xff]
        %v277 = vld [vmem:[%s216 + $0x51] sm:$0xff]
        %v278 = vld [vmem:[%s216 + $0x61] sm:$0xff]
        %v279 = vld [vmem:[%s216 + $0x69] sm:$0xff]
        %v280 = vld [vmem:[%s216 + $0x79] sm:$0xff]
        %v281 = vld [vmem:[%s216 + $0x81] sm:$0xff]
        %v282 = vld [vmem:[%s216 + $0x91] sm:$0xff]
        %v283 = vld [vmem:[%s216 + $0x99] sm:$0xff]
        %v284 = vld [vmem:[%s216 + $0xa9] sm:$0xff]
        %v285 = vld [vmem:[%s216 + $0xb1] sm:$0xff]
        %v286 = vlaneseq
        %v287 = vshrl.u32 %v286, 7
        %v288 = vsub.s32 1, %v287
        %v289 = vrot.slane %v213, %v288
        %v290 = vmul.f32 %v270, %v289
        %v291 = vmul.f32 %v271, %v289
        %v292 = vmul.f32 %v272, %v289
        %v293 = vmul.f32 %v273, %v289
        %v294 = vmul.f32 %v274, %v289
        %v295 = vmul.f32 %v275, %v289
        %v296 = vmul.f32 %v276, %v289
        %v297 = vmul.f32 %v277, %v289
        %v298 = vmul.f32 %v278, %v289
        %v299 = vmul.f32 %v279, %v289
        %v300 = vmul.f32 %v280, %v289
        %v301 = vmul.f32 %v281, %v289
        %v302 = vmul.f32 %v282, %v289
        %v303 = vmul.f32 %v283, %v289
        %v304 = vmul.f32 %v284, %v289
        %v305 = vmul.f32 %v285, %v289
        %v306 = vld [vmem:[#allocation2] sm:$0xff]
        %v307 = vld [vmem:[#allocation2 + $0x8] sm:$0xff]
        %v308 = vld [vmem:[#allocation2 + $0x10] sm:$0xff]
        %v309 = vld [vmem:[#allocation2 + $0x18] sm:$0xff]
        %v310 = vld [vmem:[#allocation2 + $0x20] sm:$0xff]
        %v311 = vld [vmem:[#allocation2 + $0x28] sm:$0xff]
        %v312 = vld [vmem:[#allocation2 + $0x30] sm:$0xff]
        %v313 = vld [vmem:[#allocation2 + $0x38] sm:$0xff]
        %v314 = vld [vmem:[#allocation2 + $0x40] sm:$0xff]
        %v315 = vld [vmem:[#allocation2 + $0x48] sm:$0xff]
        %v316 = vld [vmem:[#allocation2 + $0x50] sm:$0xff]
        %v317 = vld [vmem:[#allocation2 + $0x58] sm:$0xff]
        %v318 = vld [vmem:[#allocation2 + $0x60] sm:$0xff]
        %v319 = vld [vmem:[#allocation2 + $0x68] sm:$0xff]
        %v320 = vld [vmem:[#allocation2 + $0x70] sm:$0xff]
        %v321 = vld [vmem:[#allocation2 + $0x78] sm:$0xff]
        %v322 = vadd.f32 %v306, %v290
        %v323 = vadd.f32 %v307, %v291
        %v324 = vadd.f32 %v308, %v292
        %v325 = vadd.f32 %v309, %v293
        %v326 = vadd.f32 %v310, %v294
        %v327 = vadd.f32 %v311, %v295
        %v328 = vadd.f32 %v312, %v296
        %v329 = vadd.f32 %v313, %v297
        %v330 = vadd.f32 %v314, %v298
        %v331 = vadd.f32 %v315, %v299
        %v332 = vadd.f32 %v316, %v300
        %v333 = vadd.f32 %v317, %v301
        %v334 = vadd.f32 %v318, %v302
        %v335 = vadd.f32 %v319, %v303
        %v336 = vadd.f32 %v320, %v304
        %v337 = vadd.f32 %v321, %v305
        %338 = vst.msk [vmem:[#allocation2] sm:$0xff] %vm253, %v322
        %339 = vst.msk [vmem:[#allocation2 + $0x8] sm:$0xff] %vm253, %v323
        %340 = vst.msk [vmem:[#allocation2 + $0x10] sm:$0xff] %vm253, %v324
        %341 = vst.msk [vmem:[#allocation2 + $0x18] sm:$0xff] %vm253, %v325
        %342 = vst.msk [vmem:[#allocation2 + $0x20] sm:$0xff] %vm253, %v326
        %343 = vst.msk [vmem:[#allocation2 + $0x28] sm:$0xff] %vm253, %v327
        %344 = vst.msk [vmem:[#allocation2 + $0x30] sm:$0xff] %vm253, %v328
        %345 = vst.msk [vmem:[#allocation2 + $0x38] sm:$0xff] %vm253, %v329
        %346 = vst.msk [vmem:[#allocation2 + $0x40] sm:$0xff] %vm253, %v330
        %347 = vst.msk [vmem:[#allocation2 + $0x48] sm:$0xff] %vm253, %v331
        %348 = vst.msk [vmem:[#allocation2 + $0x50] sm:$0xff] %vm253, %v332
        %349 = vst.msk [vmem:[#allocation2 + $0x58] sm:$0xff] %vm253, %v333
        %350 = vst.msk [vmem:[#allocation2 + $0x60] sm:$0xff] %vm253, %v334
        %351 = vst.msk [vmem:[#allocation2 + $0x68] sm:$0xff] %vm253, %v335
        %352 = vst.msk [vmem:[#allocation2 + $0x70] sm:$0xff] %vm253, %v336
        %353 = vst.msk [vmem:[#allocation2 + $0x78] sm:$0xff] %vm253, %v337
        %v354 = vld [vmem:[%s216 + $0x2] sm:$0xff]
        %v355 = vld [vmem:[%s216 + $0xa] sm:$0xff]
        %v356 = vld [vmem:[%s216 + $0x1a] sm:$0xff]
        %v357 = vld [vmem:[%s216 + $0x22] sm:$0xff]
        %v358 = vld [vmem:[%s216 + $0x32] sm:$0xff]
        %v359 = vld [vmem:[%s216 + $0x3a] sm:$0xff]
        %v360 = vld [vmem:[%s216 + $0x4a] sm:$0xff]
        %v361 = vld [vmem:[%s216 + $0x52] sm:$0xff]
        %v362 = vld [vmem:[%s216 + $0x62] sm:$0xff]
        %v363 = vld [vmem:[%s216 + $0x6a] sm:$0xff]
        %v364 = vld [vmem:[%s216 + $0x7a] sm:$0xff]
        %v365 = vld [vmem:[%s216 + $0x82] sm:$0xff]
        %v366 = vld [vmem:[%s216 + $0x92] sm:$0xff]
        %v367 = vld [vmem:[%s216 + $0x9a] sm:$0xff]
        %v368 = vld [vmem:[%s216 + $0xaa] sm:$0xff]
        %v369 = vld [vmem:[%s216 + $0xb2] sm:$0xff]
        %v370 = vlaneseq
        %v371 = vshrl.u32 %v370, 7
        %v372 = vsub.s32 2, %v371
        %v373 = vrot.slane %v213, %v372
        %v374 = vmul.f32 %v354, %v373
        %v375 = vmul.f32 %v355, %v373
        %v376 = vmul.f32 %v356, %v373
        %v377 = vmul.f32 %v357, %v373
        %v378 = vmul.f32 %v358, %v373
        %v379 = vmul.f32 %v359, %v373
        %v380 = vmul.f32 %v360, %v373
        %v381 = vmul.f32 %v361, %v373
        %v382 = vmul.f32 %v362, %v373
        %v383 = vmul.f32 %v363, %v373
        %v384 = vmul.f32 %v364, %v373
        %v385 = vmul.f32 %v365, %v373
        %v386 = vmul.f32 %v366, %v373
        %v387 = vmul.f32 %v367, %v373
        %v388 = vmul.f32 %v368, %v373
        %v389 = vmul.f32 %v369, %v373
        %v390 = vld [vmem:[#allocation2] sm:$0xff]
        %v391 = vld [vmem:[#allocation2 + $0x8] sm:$0xff]
        %v392 = vld [vmem:[#allocation2 + $0x10] sm:$0xff]
        %v393 = vld [vmem:[#allocation2 + $0x18] sm:$0xff]
        %v394 = vld [vmem:[#allocation2 + $0x20] sm:$0xff]
        %v395 = vld [vmem:[#allocation2 + $0x28] sm:$0xff]
        %v396 = vld [vmem:[#allocation2 + $0x30] sm:$0xff]
        %v397 = vld [vmem:[#allocation2 + $0x38] sm:$0xff]
        %v398 = vld [vmem:[#allocation2 + $0x40] sm:$0xff]
        %v399 = vld [vmem:[#allocation2 + $0x48] sm:$0xff]
        %v400 = vld [vmem:[#allocation2 + $0x50] sm:$0xff]
        %v401 = vld [vmem:[#allocation2 + $0x58] sm:$0xff]
        %v402 = vld [vmem:[#allocation2 + $0x60] sm:$0xff]
        %v403 = vld [vmem:[#allocation2 + $0x68] sm:$0xff]
        %v404 = vld [vmem:[#allocation2 + $0x70] sm:$0xff]
        %v405 = vld [vmem:[#allocation2 + $0x78] sm:$0xff]
        %v406 = vadd.f32 %v390, %v374
        %v407 = vadd.f32 %v391, %v375
        %v408 = vadd.f32 %v392, %v376
        %v409 = vadd.f32 %v393, %v377
        %v410 = vadd.f32 %v394, %v378
        %v411 = vadd.f32 %v395, %v379
        %v412 = vadd.f32 %v396, %v380
        %v413 = vadd.f32 %v397, %v381
        %v414 = vadd.f32 %v398, %v382
        %v415 = vadd.f32 %v399, %v383
        %v416 = vadd.f32 %v400, %v384
        %v417 = vadd.f32 %v401, %v385
        %v418 = vadd.f32 %v402, %v386
        %v419 = vadd.f32 %v403, %v387
        %v420 = vadd.f32 %v404, %v388
        %v421 = vadd.f32 %v405, %v389
        %422 = vst.msk [vmem:[#allocation2] sm:$0xff] %vm253, %v406
        %423 = vst.msk [vmem:[#allocation2 + $0x8] sm:$0xff] %vm253, %v407
        %424 = vst.msk [vmem:[#allocation2 + $0x10] sm:$0xff] %vm253, %v408
        %425 = vst.msk [vmem:[#allocation2 + $0x18] sm:$0xff] %vm253, %v409
        %426 = vst.msk [vmem:[#allocation2 + $0x20] sm:$0xff] %vm253, %v410
        %427 = vst.msk [vmem:[#allocation2 + $0x28] sm:$0xff] %vm253, %v411
        %428 = vst.msk [vmem:[#allocation2 + $0x30] sm:$0xff] %vm253, %v412
        %429 = vst.msk [vmem:[#allocation2 + $0x38] sm:$0xff] %vm253, %v413
        %430 = vst.msk [vmem:[#allocation2 + $0x40] sm:$0xff] %vm253, %v414
        %431 = vst.msk [vmem:[#allocation2 + $0x48] sm:$0xff] %vm253, %v415
        %432 = vst.msk [vmem:[#allocation2 + $0x50] sm:$0xff] %vm253, %v416
        %433 = vst.msk [vmem:[#allocation2 + $0x58] sm:$0xff] %vm253, %v417
        %434 = vst.msk [vmem:[#allocation2 + $0x60] sm:$0xff] %vm253, %v418
        %435 = vst.msk [vmem:[#allocation2 + $0x68] sm:$0xff] %vm253, %v419
        %436 = vst.msk [vmem:[#allocation2 + $0x70] sm:$0xff] %vm253, %v420
        %437 = vst.msk [vmem:[#allocation2 + $0x78] sm:$0xff] %vm253, %v421
        %s438 = sadd.s32 %s212, 1
        %s439 = smul.u32 %s438, 24
        %s440 = scalar_lea.vmem %s209, %s439
        %v441 = vld [vmem:[%s440] sm:$0xff]
        %v442 = vld [vmem:[%s440 + $0x8] sm:$0xff]
        %v443 = vld [vmem:[%s440 + $0x18] sm:$0xff]
        %v444 = vld [vmem:[%s440 + $0x20] sm:$0xff]
        %v445 = vld [vmem:[%s440 + $0x30] sm:$0xff]
        %v446 = vld [vmem:[%s440 + $0x38] sm:$0xff]
        %v447 = vld [vmem:[%s440 + $0x48] sm:$0xff]
        %v448 = vld [vmem:[%s440 + $0x50] sm:$0xff]
        %v449 = vld [vmem:[%s440 + $0x60] sm:$0xff]
        %v450 = vld [vmem:[%s440 + $0x68] sm:$0xff]
        %v451 = vld [vmem:[%s440 + $0x78] sm:$0xff]
        %v452 = vld [vmem:[%s440 + $0x80] sm:$0xff]
        %v453 = vld [vmem:[%s440 + $0x90] sm:$0xff]
        %v454 = vld [vmem:[%s440 + $0x98] sm:$0xff]
        %v455 = vld [vmem:[%s440 + $0xa8] sm:$0xff]
        %v456 = vld [vmem:[%s440 + $0xb0] sm:$0xff]
        %v457 = vlaneseq
        %v458 = vshrl.u32 %v457, 7
        %v459 = vsub.s32 3, %v458
        %v460 = vrot.slane %v213, %v459
        %v461 = vmul.f32 %v441, %v460
        %v462 = vmul.f32 %v442, %v460
        %v463 = vmul.f32 %v443, %v460
        %v464 = vmul.f32 %v444, %v460
        %v465 = vmul.f32 %v445, %v460
        %v466 = vmul.f32 %v446, %v460
        %v467 = vmul.f32 %v447, %v460
        %v468 = vmul.f32 %v448, %v460
        %v469 = vmul.f32 %v449, %v460
        %v470 = vmul.f32 %v450, %v460
        %v471 = vmul.f32 %v451, %v460
        %v472 = vmul.f32 %v452, %v460
        %v473 = vmul.f32 %v453, %v460
        %v474 = vmul.f32 %v454, %v460
        %v475 = vmul.f32 %v455, %v460
        %v476 = vmul.f32 %v456, %v460
        %v477 = vld [vmem:[#allocation2] sm:$0xff]
        %v478 = vld [vmem:[#allocation2 + $0x8] sm:$0xff]
        %v479 = vld [vmem:[#allocation2 + $0x10] sm:$0xff]
        %v480 = vld [vmem:[#allocation2 + $0x18] sm:$0xff]
        %v481 = vld [vmem:[#allocation2 + $0x20] sm:$0xff]
        %v482 = vld [vmem:[#allocation2 + $0x28] sm:$0xff]
        %v483 = vld [vmem:[#allocation2 + $0x30] sm:$0xff]
        %v484 = vld [vmem:[#allocation2 + $0x38] sm:$0xff]
        %v485 = vld [vmem:[#allocation2 + $0x40] sm:$0xff]
        %v486 = vld [vmem:[#allocation2 + $0x48] sm:$0xff]
        %v487 = vld [vmem:[#allocation2 + $0x50] sm:$0xff]
        %v488 = vld [vmem:[#allocation2 + $0x58] sm:$0xff]
        %v489 = vld [vmem:[#allocation2 + $0x60] sm:$0xff]
        %v490 = vld [vmem:[#allocation2 + $0x68] sm:$0xff]
        %v491 = vld [vmem:[#allocation2 + $0x70] sm:$0xff]
        %v492 = vld [vmem:[#allocation2 + $0x78] sm:$0xff]
        %v493 = vadd.f32 %v477, %v461
        %v494 = vadd.f32 %v478, %v462
        %v495 = vadd.f32 %v479, %v463
        %v496 = vadd.f32 %v480, %v464
        %v497 = vadd.f32 %v481, %v465
        %v498 = vadd.f32 %v482, %v466
        %v499 = vadd.f32 %v483, %v467
        %v500 = vadd.f32 %v484, %v468
        %v501 = vadd.f32 %v485, %v469
        %v502 = vadd.f32 %v486, %v470
        %v503 = vadd.f32 %v487, %v471
        %v504 = vadd.f32 %v488, %v472
        %v505 = vadd.f32 %v489, %v473
        %v506 = vadd.f32 %v490, %v474
        %v507 = vadd.f32 %v491, %v475
        %v508 = vadd.f32 %v492, %v476
        %509 = vst.msk [vmem:[#allocation2] sm:$0xff] %vm253, %v493
        %510 = vst.msk [vmem:[#allocation2 + $0x8] sm:$0xff] %vm253, %v494
        %511 = vst.msk [vmem:[#allocation2 + $0x10] sm:$0xff] %vm253, %v495
        %512 = vst.msk [vmem:[#allocation2 + $0x18] sm:$0xff] %vm253, %v496
        %513 = vst.msk [vmem:[#allocation2 + $0x20] sm:$0xff] %vm253, %v497
        %514 = vst.msk [vmem:[#allocation2 + $0x28] sm:$0xff] %vm253, %v498
        %515 = vst.msk [vmem:[#allocation2 + $0x30] sm:$0xff] %vm253, %v499
        %516 = vst.msk [vmem:[#allocation2 + $0x38] sm:$0xff] %vm253, %v500
        %517 = vst.msk [vmem:[#allocation2 + $0x40] sm:$0xff] %vm253, %v501
        %518 = vst.msk [vmem:[#allocation2 + $0x48] sm:$0xff] %vm253, %v502
        %519 = vst.msk [vmem:[#allocation2 + $0x50] sm:$0xff] %vm253, %v503
        %520 = vst.msk [vmem:[#allocation2 + $0x58] sm:$0xff] %vm253, %v504
        %521 = vst.msk [vmem:[#allocation2 + $0x60] sm:$0xff] %vm253, %v505
        %522 = vst.msk [vmem:[#allocation2 + $0x68] sm:$0xff] %vm253, %v506
        %523 = vst.msk [vmem:[#allocation2 + $0x70] sm:$0xff] %vm253, %v507
        %524 = vst.msk [vmem:[#allocation2 + $0x78] sm:$0xff] %vm253, %v508
        %v525 = vld [vmem:[%s440 + $0x1] sm:$0xff]
        %v526 = vld [vmem:[%s440 + $0x9] sm:$0xff]
        %v527 = vld [vmem:[%s440 + $0x19] sm:$0xff]
        %v528 = vld [vmem:[%s440 + $0x21] sm:$0xff]
        %v529 = vld [vmem:[%s440 + $0x31] sm:$0xff]
        %v530 = vld [vmem:[%s440 + $0x39] sm:$0xff]
        %v531 = vld [vmem:[%s440 + $0x49] sm:$0xff]
        %v532 = vld [vmem:[%s440 + $0x51] sm:$0xff]
        %v533 = vld [vmem:[%s440 + $0x61] sm:$0xff]
        %v534 = vld [vmem:[%s440 + $0x69] sm:$0xff]
        %v535 = vld [vmem:[%s440 + $0x79] sm:$0xff]
        %v536 = vld [vmem:[%s440 + $0x81] sm:$0xff]
        %v537 = vld [vmem:[%s440 + $0x91] sm:$0xff]
        %v538 = vld [vmem:[%s440 + $0x99] sm:$0xff]
        %v539 = vld [vmem:[%s440 + $0xa9] sm:$0xff]
        %v540 = vld [vmem:[%s440 + $0xb1] sm:$0xff]
        %v541 = vlaneseq
        %v542 = vshrl.u32 %v541, 7
        %v543 = vsub.s32 4, %v542
        %v544 = vrot.slane %v213, %v543
        %v545 = vmul.f32 %v525, %v544
        %v546 = vmul.f32 %v526, %v544
        %v547 = vmul.f32 %v527, %v544
        %v548 = vmul.f32 %v528, %v544
        %v549 = vmul.f32 %v529, %v544
        %v550 = vmul.f32 %v530, %v544
        %v551 = vmul.f32 %v531, %v544
        %v552 = vmul.f32 %v532, %v544
        %v553 = vmul.f32 %v533, %v544
        %v554 = vmul.f32 %v534, %v544
        %v555 = vmul.f32 %v535, %v544
        %v556 = vmul.f32 %v536, %v544
        %v557 = vmul.f32 %v537, %v544
        %v558 = vmul.f32 %v538, %v544
        %v559 = vmul.f32 %v539, %v544
        %v560 = vmul.f32 %v540, %v544
        %v561 = vld [vmem:[#allocation2] sm:$0xff]
        %v562 = vld [vmem:[#allocation2 + $0x8] sm:$0xff]
        %v563 = vld [vmem:[#allocation2 + $0x10] sm:$0xff]
        %v564 = vld [vmem:[#allocation2 + $0x18] sm:$0xff]
        %v565 = vld [vmem:[#allocation2 + $0x20] sm:$0xff]
        %v566 = vld [vmem:[#allocation2 + $0x28] sm:$0xff]
        %v567 = vld [vmem:[#allocation2 + $0x30] sm:$0xff]
        %v568 = vld [vmem:[#allocation2 + $0x38] sm:$0xff]
        %v569 = vld [vmem:[#allocation2 + $0x40] sm:$0xff]
        %v570 = vld [vmem:[#allocation2 + $0x48] sm:$0xff]
        %v571 = vld [vmem:[#allocation2 + $0x50] sm:$0xff]
        %v572 = vld [vmem:[#allocation2 + $0x58] sm:$0xff]
        %v573 = vld [vmem:[#allocation2 + $0x60] sm:$0xff]
        %v574 = vld [vmem:[#allocation2 + $0x68] sm:$0xff]
        %v575 = vld [vmem:[#allocation2 + $0x70] sm:$0xff]
        %v576 = vld [vmem:[#allocation2 + $0x78] sm:$0xff]
        %v577 = vadd.f32 %v561, %v545
        %v578 = vadd.f32 %v562, %v546
        %v579 = vadd.f32 %v563, %v547
        %v580 = vadd.f32 %v564, %v548
        %v581 = vadd.f32 %v565, %v549
        %v582 = vadd.f32 %v566, %v550
        %v583 = vadd.f32 %v567, %v551
        %v584 = vadd.f32 %v568, %v552
        %v585 = vadd.f32 %v569, %v553
        %v586 = vadd.f32 %v570, %v554
        %v587 = vadd.f32 %v571, %v555
        %v588 = vadd.f32 %v572, %v556
        %v589 = vadd.f32 %v573, %v557
        %v590 = vadd.f32 %v574, %v558
        %v591 = vadd.f32 %v575, %v559
        %v592 = vadd.f32 %v576, %v560
        %593 = vst.msk [vmem:[#allocation2] sm:$0xff] %vm253, %v577
        %594 = vst.msk [vmem:[#allocation2 + $0x8] sm:$0xff] %vm253, %v578
        %595 = vst.msk [vmem:[#allocation2 + $0x10] sm:$0xff] %vm253, %v579
        %596 = vst.msk [vmem:[#allocation2 + $0x18] sm:$0xff] %vm253, %v580
        %597 = vst.msk [vmem:[#allocation2 + $0x20] sm:$0xff] %vm253, %v581
        %598 = vst.msk [vmem:[#allocation2 + $0x28] sm:$0xff] %vm253, %v582
        %599 = vst.msk [vmem:[#allocation2 + $0x30] sm:$0xff] %vm253, %v583
        %600 = vst.msk [vmem:[#allocation2 + $0x38] sm:$0xff] %vm253, %v584
        %601 = vst.msk [vmem:[#allocation2 + $0x40] sm:$0xff] %vm253, %v585
        %602 = vst.msk [vmem:[#allocation2 + $0x48] sm:$0xff] %vm253, %v586
        %603 = vst.msk [vmem:[#allocation2 + $0x50] sm:$0xff] %vm253, %v587
        %604 = vst.msk [vmem:[#allocation2 + $0x58] sm:$0xff] %vm253, %v588
        %605 = vst.msk [vmem:[#allocation2 + $0x60] sm:$0xff] %vm253, %v589
        %606 = vst.msk [vmem:[#allocation2 + $0x68] sm:$0xff] %vm253, %v590
        %607 = vst.msk [vmem:[#allocation2 + $0x70] sm:$0xff] %vm253, %v591
        %608 = vst.msk [vmem:[#allocation2 + $0x78] sm:$0xff] %vm253, %v592
        %v609 = vld [vmem:[%s440 + $0x2] sm:$0xff]
        %v610 = vld [vmem:[%s440 + $0xa] sm:$0xff]
        %v611 = vld [vmem:[%s440 + $0x1a] sm:$0xff]
        %v612 = vld [vmem:[%s440 + $0x22] sm:$0xff]
        %v613 = vld [vmem:[%s440 + $0x32] sm:$0xff]
        %v614 = vld [vmem:[%s440 + $0x3a] sm:$0xff]
        %v615 = vld [vmem:[%s440 + $0x4a] sm:$0xff]
        %v616 = vld [vmem:[%s440 + $0x52] sm:$0xff]
        %v617 = vld [vmem:[%s440 + $0x62] sm:$0xff]
        %v618 = vld [vmem:[%s440 + $0x6a] sm:$0xff]
        %v619 = vld [vmem:[%s440 + $0x7a] sm:$0xff]
        %v620 = vld [vmem:[%s440 + $0x82] sm:$0xff]
        %v621 = vld [vmem:[%s440 + $0x92] sm:$0xff]
        %v622 = vld [vmem:[%s440 + $0x9a] sm:$0xff]
        %v623 = vld [vmem:[%s440 + $0xaa] sm:$0xff]
        %v624 = vld [vmem:[%s440 + $0xb2] sm:$0xff]
        %v625 = vlaneseq
        %v626 = vshrl.u32 %v625, 7
        %v627 = vsub.s32 5, %v626
        %v628 = vrot.slane %v213, %v627
        %v629 = vmul.f32 %v609, %v628
        %v630 = vmul.f32 %v610, %v628
        %v631 = vmul.f32 %v611, %v628
        %v632 = vmul.f32 %v612, %v628
        %v633 = vmul.f32 %v613, %v628
        %v634 = vmul.f32 %v614, %v628
        %v635 = vmul.f32 %v615, %v628
        %v636 = vmul.f32 %v616, %v628
        %v637 = vmul.f32 %v617, %v628
        %v638 = vmul.f32 %v618, %v628
        %v639 = vmul.f32 %v619, %v628
        %v640 = vmul.f32 %v620, %v628
        %v641 = vmul.f32 %v621, %v628
        %v642 = vmul.f32 %v622, %v628
        %v643 = vmul.f32 %v623, %v628
        %v644 = vmul.f32 %v624, %v628
        %v645 = vld [vmem:[#allocation2] sm:$0xff]
        %v646 = vld [vmem:[#allocation2 + $0x8] sm:$0xff]
        %v647 = vld [vmem:[#allocation2 + $0x10] sm:$0xff]
        %v648 = vld [vmem:[#allocation2 + $0x18] sm:$0xff]
        %v649 = vld [vmem:[#allocation2 + $0x20] sm:$0xff]
        %v650 = vld [vmem:[#allocation2 + $0x28] sm:$0xff]
        %v651 = vld [vmem:[#allocation2 + $0x30] sm:$0xff]
        %v652 = vld [vmem:[#allocation2 + $0x38] sm:$0xff]
        %v653 = vld [vmem:[#allocation2 + $0x40] sm:$0xff]
        %v654 = vld [vmem:[#allocation2 + $0x48] sm:$0xff]
        %v655 = vld [vmem:[#allocation2 + $0x50] sm:$0xff]
        %v656 = vld [vmem:[#allocation2 + $0x58] sm:$0xff]
        %v657 = vld [vmem:[#allocation2 + $0x60] sm:$0xff]
        %v658 = vld [vmem:[#allocation2 + $0x68] sm:$0xff]
        %v659 = vld [vmem:[#allocation2 + $0x70] sm:$0xff]
        %v660 = vld [vmem:[#allocation2 + $0x78] sm:$0xff]
        %v661 = vadd.f32 %v645, %v629
        %v662 = vadd.f32 %v646, %v630
        %v663 = vadd.f32 %v647, %v631
        %v664 = vadd.f32 %v648, %v632
        %v665 = vadd.f32 %v649, %v633
        %v666 = vadd.f32 %v650, %v634
        %v667 = vadd.f32 %v651, %v635
        %v668 = vadd.f32 %v652, %v636
        %v669 = vadd.f32 %v653, %v637
        %v670 = vadd.f32 %v654, %v638
        %v671 = vadd.f32 %v655, %v639
        %v672 = vadd.f32 %v656, %v640
        %v673 = vadd.f32 %v657, %v641
        %v674 = vadd.f32 %v658, %v642
        %v675 = vadd.f32 %v659, %v643
        %v676 = vadd.f32 %v660, %v644
        %677 = vst.msk [vmem:[#allocation2] sm:$0xff] %vm253, %v661
        %678 = vst.msk [vmem:[#allocation2 + $0x8] sm:$0xff] %vm253, %v662
        %679 = vst.msk [vmem:[#allocation2 + $0x10] sm:$0xff] %vm253, %v663
        %680 = vst.msk [vmem:[#allocation2 + $0x18] sm:$0xff] %vm253, %v664
        %681 = vst.msk [vmem:[#allocation2 + $0x20] sm:$0xff] %vm253, %v665
        %682 = vst.msk [vmem:[#allocation2 + $0x28] sm:$0xff] %vm253, %v666
        %683 = vst.msk [vmem:[#allocation2 + $0x30] sm:$0xff] %vm253, %v667
        %684 = vst.msk [vmem:[#allocation2 + $0x38] sm:$0xff] %vm253, %v668
        %685 = vst.msk [vmem:[#allocation2 + $0x40] sm:$0xff] %vm253, %v669
        %686 = vst.msk [vmem:[#allocation2 + $0x48] sm:$0xff] %vm253, %v670
        %687 = vst.msk [vmem:[#allocation2 + $0x50] sm:$0xff] %vm253, %v671
        %688 = vst.msk [vmem:[#allocation2 + $0x58] sm:$0xff] %vm253, %v672
        %689 = vst.msk [vmem:[#allocation2 + $0x60] sm:$0xff] %vm253, %v673
        %690 = vst.msk [vmem:[#allocation2 + $0x68] sm:$0xff] %vm253, %v674
        %691 = vst.msk [vmem:[#allocation2 + $0x70] sm:$0xff] %vm253, %v675
        %692 = vst.msk [vmem:[#allocation2 + $0x78] sm:$0xff] %vm253, %v676
        %s693 = sadd.s32 %s212, 2
        %s694 = smul.u32 %s693, 24
        %s695 = scalar_lea.vmem %s209, %s694
        %v696 = vld [vmem:[%s695] sm:$0xff]
        %v697 = vld [vmem:[%s695 + $0x8] sm:$0xff]
        %v698 = vld [vmem:[%s695 + $0x18] sm:$0xff]
        %v699 = vld [vmem:[%s695 + $0x20] sm:$0xff]
        %v700 = vld [vmem:[%s695 + $0x30] sm:$0xff]
        %v701 = vld [vmem:[%s695 + $0x38] sm:$0xff]
        %v702 = vld [vmem:[%s695 + $0x48] sm:$0xff]
        %v703 = vld [vmem:[%s695 + $0x50] sm:$0xff]
        %v704 = vld [vmem:[%s695 + $0x60] sm:$0xff]
        %v705 = vld [vmem:[%s695 + $0x68] sm:$0xff]
        %v706 = vld [vmem:[%s695 + $0x78] sm:$0xff]
        %v707 = vld [vmem:[%s695 + $0x80] sm:$0xff]
        %v708 = vld [vmem:[%s695 + $0x90] sm:$0xff]
        %v709 = vld [vmem:[%s695 + $0x98] sm:$0xff]
        %v710 = vld [vmem:[%s695 + $0xa8] sm:$0xff]
        %v711 = vld [vmem:[%s695 + $0xb0] sm:$0xff]
        %v712 = vlaneseq
        %v713 = vshrl.u32 %v712, 7
        %v714 = vsub.s32 6, %v713
        %v715 = vrot.slane %v213, %v714
        %v716 = vmul.f32 %v696, %v715
        %v717 = vmul.f32 %v697, %v715
        %v718 = vmul.f32 %v698, %v715
        %v719 = vmul.f32 %v699, %v715
        %v720 = vmul.f32 %v700, %v715
        %v721 = vmul.f32 %v701, %v715
        %v722 = vmul.f32 %v702, %v715
        %v723 = vmul.f32 %v703, %v715
        %v724 = vmul.f32 %v704, %v715
        %v725 = vmul.f32 %v705, %v715
        %v726 = vmul.f32 %v706, %v715
        %v727 = vmul.f32 %v707, %v715
        %v728 = vmul.f32 %v708, %v715
        %v729 = vmul.f32 %v709, %v715
        %v730 = vmul.f32 %v710, %v715
        %v731 = vmul.f32 %v711, %v715
        %v732 = vld [vmem:[#allocation2] sm:$0xff]
        %v733 = vld [vmem:[#allocation2 + $0x8] sm:$0xff]
        %v734 = vld [vmem:[#allocation2 + $0x10] sm:$0xff]
        %v735 = vld [vmem:[#allocation2 + $0x18] sm:$0xff]
        %v736 = vld [vmem:[#allocation2 + $0x20] sm:$0xff]
        %v737 = vld [vmem:[#allocation2 + $0x28] sm:$0xff]
        %v738 = vld [vmem:[#allocation2 + $0x30] sm:$0xff]
        %v739 = vld [vmem:[#allocation2 + $0x38] sm:$0xff]
        %v740 = vld [vmem:[#allocation2 + $0x40] sm:$0xff]
        %v741 = vld [vmem:[#allocation2 + $0x48] sm:$0xff]
        %v742 = vld [vmem:[#allocation2 + $0x50] sm:$0xff]
        %v743 = vld [vmem:[#allocation2 + $0x58] sm:$0xff]
        %v744 = vld [vmem:[#allocation2 + $0x60] sm:$0xff]
        %v745 = vld [vmem:[#allocation2 + $0x68] sm:$0xff]
        %v746 = vld [vmem:[#allocation2 + $0x70] sm:$0xff]
        %v747 = vld [vmem:[#allocation2 + $0x78] sm:$0xff]
        %v748 = vadd.f32 %v732, %v716
        %v749 = vadd.f32 %v733, %v717
        %v750 = vadd.f32 %v734, %v718
        %v751 = vadd.f32 %v735, %v719
        %v752 = vadd.f32 %v736, %v720
        %v753 = vadd.f32 %v737, %v721
        %v754 = vadd.f32 %v738, %v722
        %v755 = vadd.f32 %v739, %v723
        %v756 = vadd.f32 %v740, %v724
        %v757 = vadd.f32 %v741, %v725
        %v758 = vadd.f32 %v742, %v726
        %v759 = vadd.f32 %v743, %v727
        %v760 = vadd.f32 %v744, %v728
        %v761 = vadd.f32 %v745, %v729
        %v762 = vadd.f32 %v746, %v730
        %v763 = vadd.f32 %v747, %v731
        %764 = vst.msk [vmem:[#allocation2] sm:$0xff] %vm253, %v748
        %765 = vst.msk [vmem:[#allocation2 + $0x8] sm:$0xff] %vm253, %v749
        %766 = vst.msk [vmem:[#allocation2 + $0x10] sm:$0xff] %vm253, %v750
        %767 = vst.msk [vmem:[#allocation2 + $0x18] sm:$0xff] %vm253, %v751
        %768 = vst.msk [vmem:[#allocation2 + $0x20] sm:$0xff] %vm253, %v752
        %769 = vst.msk [vmem:[#allocation2 + $0x28] sm:$0xff] %vm253, %v753
        %770 = vst.msk [vmem:[#allocation2 + $0x30] sm:$0xff] %vm253, %v754
        %771 = vst.msk [vmem:[#allocation2 + $0x38] sm:$0xff] %vm253, %v755
        %772 = vst.msk [vmem:[#allocation2 + $0x40] sm:$0xff] %vm253, %v756
        %773 = vst.msk [vmem:[#allocation2 + $0x48] sm:$0xff] %vm253, %v757
        %774 = vst.msk [vmem:[#allocation2 + $0x50] sm:$0xff] %vm253, %v758
        %775 = vst.msk [vmem:[#allocation2 + $0x58] sm:$0xff] %vm253, %v759
        %776 = vst.msk [vmem:[#allocation2 + $0x60] sm:$0xff] %vm253, %v760
        %777 = vst.msk [vmem:[#allocation2 + $0x68] sm:$0xff] %vm253, %v761
        %778 = vst.msk [vmem:[#allocation2 + $0x70] sm:$0xff] %vm253, %v762
        %779 = vst.msk [vmem:[#allocation2 + $0x78] sm:$0xff] %vm253, %v763
        %v780 = vld [vmem:[%s695 + $0x1] sm:$0xff]
        %v781 = vld [vmem:[%s695 + $0x9] sm:$0xff]
        %v782 = vld [vmem:[%s695 + $0x19] sm:$0xff]
        %v783 = vld [vmem:[%s695 + $0x21] sm:$0xff]
        %v784 = vld [vmem:[%s695 + $0x31] sm:$0xff]
        %v785 = vld [vmem:[%s695 + $0x39] sm:$0xff]
        %v786 = vld [vmem:[%s695 + $0x49] sm:$0xff]
        %v787 = vld [vmem:[%s695 + $0x51] sm:$0xff]
        %v788 = vld [vmem:[%s695 + $0x61] sm:$0xff]
        %v789 = vld [vmem:[%s695 + $0x69] sm:$0xff]
        %v790 = vld [vmem:[%s695 + $0x79] sm:$0xff]
        %v791 = vld [vmem:[%s695 + $0x81] sm:$0xff]
        %v792 = vld [vmem:[%s695 + $0x91] sm:$0xff]
        %v793 = vld [vmem:[%s695 + $0x99] sm:$0xff]
        %v794 = vld [vmem:[%s695 + $0xa9] sm:$0xff]
        %v795 = vld [vmem:[%s695 + $0xb1] sm:$0xff]
        %v796 = vlaneseq
        %v797 = vshrl.u32 %v796, 7
        %v798 = vsub.s32 7, %v797
        %v799 = vrot.slane %v213, %v798
        %v800 = vmul.f32 %v780, %v799
        %v801 = vmul.f32 %v781, %v799
        %v802 = vmul.f32 %v782, %v799
        %v803 = vmul.f32 %v783, %v799
        %v804 = vmul.f32 %v784, %v799
        %v805 = vmul.f32 %v785, %v799
        %v806 = vmul.f32 %v786, %v799
        %v807 = vmul.f32 %v787, %v799
        %v808 = vmul.f32 %v788, %v799
        %v809 = vmul.f32 %v789, %v799
        %v810 = vmul.f32 %v790, %v799
        %v811 = vmul.f32 %v791, %v799
        %v812 = vmul.f32 %v792, %v799
        %v813 = vmul.f32 %v793, %v799
        %v814 = vmul.f32 %v794, %v799
        %v815 = vmul.f32 %v795, %v799
        %v816 = vld [vmem:[#allocation2] sm:$0xff]
        %v817 = vld [vmem:[#allocation2 + $0x8] sm:$0xff]
        %v818 = vld [vmem:[#allocation2 + $0x10] sm:$0xff]
        %v819 = vld [vmem:[#allocation2 + $0x18] sm:$0xff]
        %v820 = vld [vmem:[#allocation2 + $0x20] sm:$0xff]
        %v821 = vld [vmem:[#allocation2 + $0x28] sm:$0xff]
        %v822 = vld [vmem:[#allocation2 + $0x30] sm:$0xff]
        %v823 = vld [vmem:[#allocation2 + $0x38] sm:$0xff]
        %v824 = vld [vmem:[#allocation2 + $0x40] sm:$0xff]
        %v825 = vld [vmem:[#allocation2 + $0x48] sm:$0xff]
        %v826 = vld [vmem:[#allocation2 + $0x50] sm:$0xff]
        %v827 = vld [vmem:[#allocation2 + $0x58] sm:$0xff]
        %v828 = vld [vmem:[#allocation2 + $0x60] sm:$0xff]
        %v829 = vld [vmem:[#allocation2 + $0x68] sm:$0xff]
        %v830 = vld [vmem:[#allocation2 + $0x70] sm:$0xff]
        %v831 = vld [vmem:[#allocation2 + $0x78] sm:$0xff]
        %v832 = vadd.f32 %v816, %v800
        %v833 = vadd.f32 %v817, %v801
        %v834 = vadd.f32 %v818, %v802
        %v835 = vadd.f32 %v819, %v803
        %v836 = vadd.f32 %v820, %v804
        %v837 = vadd.f32 %v821, %v805
        %v838 = vadd.f32 %v822, %v806
        %v839 = vadd.f32 %v823, %v807
        %v840 = vadd.f32 %v824, %v808
        %v841 = vadd.f32 %v825, %v809
        %v842 = vadd.f32 %v826, %v810
        %v843 = vadd.f32 %v827, %v811
        %v844 = vadd.f32 %v828, %v812
        %v845 = vadd.f32 %v829, %v813
        %v846 = vadd.f32 %v830, %v814
        %v847 = vadd.f32 %v831, %v815
        %848 = vst.msk [vmem:[#allocation2] sm:$0xff] %vm253, %v832
        %849 = vst.msk [vmem:[#allocation2 + $0x8] sm:$0xff] %vm253, %v833
        %850 = vst.msk [vmem:[#allocation2 + $0x10] sm:$0xff] %vm253, %v834
        %851 = vst.msk [vmem:[#allocation2 + $0x18] sm:$0xff] %vm253, %v835
        %852 = vst.msk [vmem:[#allocation2 + $0x20] sm:$0xff] %vm253, %v836
        %853 = vst.msk [vmem:[#allocation2 + $0x28] sm:$0xff] %vm253, %v837
        %854 = vst.msk [vmem:[#allocation2 + $0x30] sm:$0xff] %vm253, %v838
        %855 = vst.msk [vmem:[#allocation2 + $0x38] sm:$0xff] %vm253, %v839
        %856 = vst.msk [vmem:[#allocation2 + $0x40] sm:$0xff] %vm253, %v840
        %857 = vst.msk [vmem:[#allocation2 + $0x48] sm:$0xff] %vm253, %v841
        %858 = vst.msk [vmem:[#allocation2 + $0x50] sm:$0xff] %vm253, %v842
        %859 = vst.msk [vmem:[#allocation2 + $0x58] sm:$0xff] %vm253, %v843
        %860 = vst.msk [vmem:[#allocation2 + $0x60] sm:$0xff] %vm253, %v844
        %861 = vst.msk [vmem:[#allocation2 + $0x68] sm:$0xff] %vm253, %v845
        %862 = vst.msk [vmem:[#allocation2 + $0x70] sm:$0xff] %vm253, %v846
        %863 = vst.msk [vmem:[#allocation2 + $0x78] sm:$0xff] %vm253, %v847
        %v864 = vld [vmem:[%s695 + $0x2] sm:$0xff]
        %v865 = vld [vmem:[%s695 + $0xa] sm:$0xff]
        %v866 = vld [vmem:[%s695 + $0x1a] sm:$0xff]
        %v867 = vld [vmem:[%s695 + $0x22] sm:$0xff]
        %v868 = vld [vmem:[%s695 + $0x32] sm:$0xff]
        %v869 = vld [vmem:[%s695 + $0x3a] sm:$0xff]
        %v870 = vld [vmem:[%s695 + $0x4a] sm:$0xff]
        %v871 = vld [vmem:[%s695 + $0x52] sm:$0xff]
        %v872 = vld [vmem:[%s695 + $0x62] sm:$0xff]
        %v873 = vld [vmem:[%s695 + $0x6a] sm:$0xff]
        %v874 = vld [vmem:[%s695 + $0x7a] sm:$0xff]
        %v875 = vld [vmem:[%s695 + $0x82] sm:$0xff]
        %v876 = vld [vmem:[%s695 + $0x92] sm:$0xff]
        %v877 = vld [vmem:[%s695 + $0x9a] sm:$0xff]
        %v878 = vld [vmem:[%s695 + $0xaa] sm:$0xff]
        %v879 = vld [vmem:[%s695 + $0xb2] sm:$0xff]
        %v880 = vlaneseq
        %v881 = vshrl.u32 %v880, 7
        %v882 = vsub.s32 0, %v881
        %v883 = vrot.slane %v214, %v882
        %v884 = vmul.f32 %v864, %v883
        %v885 = vmul.f32 %v865, %v883
        %v886 = vmul.f32 %v866, %v883
        %v887 = vmul.f32 %v867, %v883
        %v888 = vmul.f32 %v868, %v883
        %v889 = vmul.f32 %v869, %v883
        %v890 = vmul.f32 %v870, %v883
        %v891 = vmul.f32 %v871, %v883
        %v892 = vmul.f32 %v872, %v883
        %v893 = vmul.f32 %v873, %v883
        %v894 = vmul.f32 %v874, %v883
        %v895 = vmul.f32 %v875, %v883
        %v896 = vmul.f32 %v876, %v883
        %v897 = vmul.f32 %v877, %v883
        %v898 = vmul.f32 %v878, %v883
        %v899 = vmul.f32 %v879, %v883
        %v900 = vld [vmem:[#allocation2] sm:$0xff]
        %v901 = vld [vmem:[#allocation2 + $0x8] sm:$0xff]
        %v902 = vld [vmem:[#allocation2 + $0x10] sm:$0xff]
        %v903 = vld [vmem:[#allocation2 + $0x18] sm:$0xff]
        %v904 = vld [vmem:[#allocation2 + $0x20] sm:$0xff]
        %v905 = vld [vmem:[#allocation2 + $0x28] sm:$0xff]
        %v906 = vld [vmem:[#allocation2 + $0x30] sm:$0xff]
        %v907 = vld [vmem:[#allocation2 + $0x38] sm:$0xff]
        %v908 = vld [vmem:[#allocation2 + $0x40] sm:$0xff]
        %v909 = vld [vmem:[#allocation2 + $0x48] sm:$0xff]
        %v910 = vld [vmem:[#allocation2 + $0x50] sm:$0xff]
        %v911 = vld [vmem:[#allocation2 + $0x58] sm:$0xff]
        %v912 = vld [vmem:[#allocation2 + $0x60] sm:$0xff]
        %v913 = vld [vmem:[#allocation2 + $0x68] sm:$0xff]
        %v914 = vld [vmem:[#allocation2 + $0x70] sm:$0xff]
        %v915 = vld [vmem:[#allocation2 + $0x78] sm:$0xff]
        %v916 = vadd.f32 %v900, %v884
        %v917 = vadd.f32 %v901, %v885
        %v918 = vadd.f32 %v902, %v886
        %v919 = vadd.f32 %v903, %v887
        %v920 = vadd.f32 %v904, %v888
        %v921 = vadd.f32 %v905, %v889
        %v922 = vadd.f32 %v906, %v890
        %v923 = vadd.f32 %v907, %v891
        %v924 = vadd.f32 %v908, %v892
        %v925 = vadd.f32 %v909, %v893
        %v926 = vadd.f32 %v910, %v894
        %v927 = vadd.f32 %v911, %v895
        %v928 = vadd.f32 %v912, %v896
        %v929 = vadd.f32 %v913, %v897
        %v930 = vadd.f32 %v914, %v898
        %v931 = vadd.f32 %v915, %v899
        %932 = vst.msk [vmem:[#allocation2] sm:$0xff] %vm253, %v916
        %933 = vst.msk [vmem:[#allocation2 + $0x8] sm:$0xff] %vm253, %v917
        %934 = vst.msk [vmem:[#allocation2 + $0x10] sm:$0xff] %vm253, %v918
        %935 = vst.msk [vmem:[#allocation2 + $0x18] sm:$0xff] %vm253, %v919
        %936 = vst.msk [vmem:[#allocation2 + $0x20] sm:$0xff] %vm253, %v920
        %937 = vst.msk [vmem:[#allocation2 + $0x28] sm:$0xff] %vm253, %v921
        %938 = vst.msk [vmem:[#allocation2 + $0x30] sm:$0xff] %vm253, %v922
        %939 = vst.msk [vmem:[#allocation2 + $0x38] sm:$0xff] %vm253, %v923
        %940 = vst.msk [vmem:[#allocation2 + $0x40] sm:$0xff] %vm253, %v924
        %941 = vst.msk [vmem:[#allocation2 + $0x48] sm:$0xff] %vm253, %v925
        %942 = vst.msk [vmem:[#allocation2 + $0x50] sm:$0xff] %vm253, %v926
        %943 = vst.msk [vmem:[#allocation2 + $0x58] sm:$0xff] %vm253, %v927
        %944 = vst.msk [vmem:[#allocation2 + $0x60] sm:$0xff] %vm253, %v928
        %945 = vst.msk [vmem:[#allocation2 + $0x68] sm:$0xff] %vm253, %v929
        %946 = vst.msk [vmem:[#allocation2 + $0x70] sm:$0xff] %vm253, %v930
        %947 = vst.msk [vmem:[#allocation2 + $0x78] sm:$0xff] %vm253, %v931
        %v948 = vld [vmem:[#allocation2] sm:$0xff]
        %v949 = vld [vmem:[#allocation2 + $0x8] sm:$0xff]
        %v950 = vld [vmem:[#allocation2 + $0x10] sm:$0xff]
        %v951 = vld [vmem:[#allocation2 + $0x18] sm:$0xff]
        %v952 = vld [vmem:[#allocation2 + $0x20] sm:$0xff]
        %v953 = vld [vmem:[#allocation2 + $0x28] sm:$0xff]
        %v954 = vld [vmem:[#allocation2 + $0x30] sm:$0xff]
        %v955 = vld [vmem:[#allocation2 + $0x38] sm:$0xff]
        %v956 = vld [vmem:[#allocation2 + $0x40] sm:$0xff]
        %v957 = vld [vmem:[#allocation2 + $0x48] sm:$0xff]
        %v958 = vld [vmem:[#allocation2 + $0x50] sm:$0xff]
        %v959 = vld [vmem:[#allocation2 + $0x58] sm:$0xff]
        %v960 = vld [vmem:[#allocation2 + $0x60] sm:$0xff]
        %v961 = vld [vmem:[#allocation2 + $0x68] sm:$0xff]
        %v962 = vld [vmem:[#allocation2 + $0x70] sm:$0xff]
        %v963 = vld [vmem:[#allocation2 + $0x78] sm:$0xff]
        %v964 = vpack.c.bf16 %v949, %v948
        %v965 = vpack.c.bf16 %v951, %v950
        %v966 = vpack.c.bf16 %v953, %v952
        %v967 = vpack.c.bf16 %v955, %v954
        %v968 = vpack.c.bf16 %v957, %v956
        %v969 = vpack.c.bf16 %v959, %v958
        %v970 = vpack.c.bf16 %v961, %v960
        %v971 = vpack.c.bf16 %v963, %v962
        %v972 = vld [vmem:[%s2] sm:$0x3]
        %v973 = vld [vmem:[%s3] sm:$0x1]
        %v975 = vlaneseq
        %v976 = vshrl.u32 %v975, 7
        %v977 = vsub.s32 0, %v976
        %v978 = vrot.slane %v973, %v977
        %v981 = vsel %vm253, %v964, 0
        %v984 = vsel %vm253, %v965, 0
        %v987 = vsel %vm253, %v966, 0
        %v990 = vsel %vm253, %v967, 0
        %v993 = vsel %vm253, %v968, 0
        %v996 = vsel %vm253, %v969, 0
        %v999 = vsel %vm253, %v970, 0
        %v1002 = vsel %vm253, %v971, 0
        %vm1004 = vcmask 1041408
        %v1006 = vsel %vm1004, %v972, 0
        %1008 = vmatprep.subr.bf16.mxu0 0
        %1009 = vmatpush1.bf16.msra.mxu0 %v1006
        %1010 = vmatprep.subr.bf16.mxu0 0
        %1011 = vmatpush1.bf16.msra.mxu0 0
        %1012 = vmatprep.subr.bf16.mxu0 0
        %1013 = vmatpush1.bf16.msra.mxu0 0
        %1014 = vmatprep.subr.bf16.mxu0 0
        %1015 = vmatpush1.bf16.msra.mxu0 0
        %1016 = vmatprep.subr.bf16.mxu0 0
        %1017 = vmatpush1.bf16.msra.mxu0 0
        %1018 = vmatprep.subr.bf16.mxu0 0
        %1019 = vmatpush1.bf16.msra.mxu0 0
        %1020 = vmatprep.subr.bf16.mxu0 0
        %1021 = vmatpush1.bf16.msra.mxu0 0
        %1022 = vmatprep.subr.bf16.mxu0 0
        %1023 = vmatpush1.bf16.msra.mxu0 0
        %1024 = vmatprep.subr.bf16.mxu0 0
        %1025 = vmatpush1.bf16.msra.mxu0 0
        %1026 = vmatprep.subr.bf16.mxu0 0
        %1027 = vmatpush1.bf16.msra.mxu0 0
        %1028 = vmatprep.subr.bf16.mxu0 0
        %1029 = vmatpush1.bf16.msra.mxu0 0
        %1030 = vmatprep.subr.bf16.mxu0 0
        %1031 = vmatpush1.bf16.msra.mxu0 0
        %1032 = vmatprep.subr.bf16.mxu0 0
        %1033 = vmatpush1.bf16.msra.mxu0 0
        %1034 = vmatprep.subr.bf16.mxu0 0
        %1035 = vmatpush1.bf16.msra.mxu0 0
        %1036 = vmatprep.subr.bf16.mxu0 0
        %1037 = vmatpush1.bf16.msra.mxu0 0
        %1038 = vmatprep.subr.bf16.mxu0 0
        %1039 = vmatpush1.bf16.msra.mxu0 0
        %1040 = vmatprep.mubr.bf16.mxu0 0
        %1041 = vmatmul.mubr.bf16.gmra.mrb[0].mxu0 %v981
        %v1042 = vpop.f32.mrb[0].mxu0
        %v1043 = vadd.f32 %v978, %v1042
        %v1044 = vpop.f32.mrb[0].mxu0
        %v1045 = vpop.f32.mrb[0].mxu0
        %v1046 = vadd.f32 %v978, %v1045
        %v1047 = vpop.f32.mrb[0].mxu0
        %1048 = vmatprep.mubr.bf16.mxu0 0
        %1049 = vmatmul.mubr.bf16.gmra.mrb[0].mxu0 %v984
        %v1050 = vpop.f32.mrb[0].mxu0
        %v1051 = vadd.f32 %v978, %v1050
        %v1052 = vpop.f32.mrb[0].mxu0
        %v1053 = vpop.f32.mrb[0].mxu0
        %v1054 = vadd.f32 %v978, %v1053
        %v1055 = vpop.f32.mrb[0].mxu0
        %1056 = vmatprep.mubr.bf16.mxu0 0
        %1057 = vmatmul.mubr.bf16.gmra.mrb[0].mxu0 %v987
        %v1058 = vpop.f32.mrb[0].mxu0
        %v1059 = vadd.f32 %v978, %v1058
        %v1060 = vpop.f32.mrb[0].mxu0
        %v1061 = vpop.f32.mrb[0].mxu0
        %v1062 = vadd.f32 %v978, %v1061
        %v1063 = vpop.f32.mrb[0].mxu0
        %1064 = vmatprep.mubr.bf16.mxu0 0
        %1065 = vmatmul.mubr.bf16.gmra.mrb[0].mxu0 %v990
        %v1066 = vpop.f32.mrb[0].mxu0
        %v1067 = vadd.f32 %v978, %v1066
        %v1068 = vpop.f32.mrb[0].mxu0
        %v1069 = vpop.f32.mrb[0].mxu0
        %v1070 = vadd.f32 %v978, %v1069
        %v1071 = vpop.f32.mrb[0].mxu0
        %1072 = vmatprep.mubr.bf16.mxu0 0
        %1073 = vmatmul.mubr.bf16.gmra.mrb[0].mxu0 %v993
        %v1074 = vpop.f32.mrb[0].mxu0
        %v1075 = vadd.f32 %v978, %v1074
        %v1076 = vpop.f32.mrb[0].mxu0
        %v1077 = vpop.f32.mrb[0].mxu0
        %v1078 = vadd.f32 %v978, %v1077
        %v1079 = vpop.f32.mrb[0].mxu0
        %1080 = vmatprep.mubr.bf16.mxu0 0
        %1081 = vmatmul.mubr.bf16.gmra.mrb[0].mxu0 %v996
        %v1082 = vpop.f32.mrb[0].mxu0
        %v1083 = vadd.f32 %v978, %v1082
        %v1084 = vpop.f32.mrb[0].mxu0
        %v1085 = vpop.f32.mrb[0].mxu0
        %v1086 = vadd.f32 %v978, %v1085
        %v1087 = vpop.f32.mrb[0].mxu0
        %1088 = vmatprep.mubr.bf16.mxu0 0
        %1089 = vmatmul.mubr.bf16.gmra.mrb[0].mxu0 %v999
        %v1090 = vpop.f32.mrb[0].mxu0
        %v1091 = vadd.f32 %v978, %v1090
        %v1092 = vpop.f32.mrb[0].mxu0
        %v1093 = vpop.f32.mrb[0].mxu0
        %v1094 = vadd.f32 %v978, %v1093
        %v1095 = vpop.f32.mrb[0].mxu0
        %1096 = vmatprep.mubr.bf16.mxu0 0
        %1097 = vmatmul.mubr.bf16.gmra.mrb[0].mxu0 %v1002
        %v1098 = vpop.f32.mrb[0].mxu0
        %v1099 = vadd.f32 %v978, %v1098
        %v1100 = vpop.f32.mrb[0].mxu0
        %v1101 = vpop.f32.mrb[0].mxu0
        %v1102 = vadd.f32 %v978, %v1101
        %v1103 = vpop.f32.mrb[0].mxu0
        %1104 = vdwg.mxu0
        %1105 = vst [vmem:[%s204] sm:$0xff] %v1043
        %1106 = vst [vmem:[%s204 + $0x8] sm:$0xff] %v1046
        %1107 = vst [vmem:[%s204 + $0x10] sm:$0xff] %v1051
        %1108 = vst [vmem:[%s204 + $0x18] sm:$0xff] %v1054
        %1109 = vst [vmem:[%s204 + $0x20] sm:$0xff] %v1059
        %1110 = vst [vmem:[%s204 + $0x28] sm:$0xff] %v1062
        %1111 = vst [vmem:[%s204 + $0x30] sm:$0xff] %v1067
        %1112 = vst [vmem:[%s204 + $0x38] sm:$0xff] %v1070
        %1113 = vst [vmem:[%s204 + $0x40] sm:$0xff] %v1075
        %1114 = vst [vmem:[%s204 + $0x48] sm:$0xff] %v1078
        %1115 = vst [vmem:[%s204 + $0x50] sm:$0xff] %v1083
        %1116 = vst [vmem:[%s204 + $0x58] sm:$0xff] %v1086
        %1117 = vst [vmem:[%s204 + $0x60] sm:$0xff] %v1091
        %1118 = vst [vmem:[%s204 + $0x68] sm:$0xff] %v1094
        %1119 = vst [vmem:[%s204 + $0x70] sm:$0xff] %v1099
        %1120 = vst [vmem:[%s204 + $0x78] sm:$0xff] %v1102
        %s1121 = sand.u32 %s129, 1
        %s1122 = scalar_lea.sflag [#allocation4], %s1121
        %s1123 = sand.u32 %s129, 1
        %s1124 = smul.addr %s1123, 128
        %s1125 = scalar_lea.vmem [#allocation3], %s1124
        // Predicated region
        $region37: #{tpu_custom_call.1} parent=35 // pred_check
          %p1126 = pneg %p139
        $region38: #{tpu_custom_call.1} parent=35 // pred_check_branch
          %1128 = sbr.rel (%p1126) target = $region40
        $region39: #{tpu_custom_call.1} parent=35 // pred_region
          %s1129 = smul.u32 8, %s23
          %s1131 = ssub.s32 2048, 2048
          %1132 = vsyncadd %s1122, %s1131
          %s1133 = smul.addr %s1129, 2
          %s1134 = smul.addr %s22, 32
          %s1135 = sadd.s32 %s1133, %s1134
          %s1136 = smul.addr %s1135, 128
          %s1137 = scalar_lea.hbm %s4, %s1136
          %s1138 = sshll.u32 %s1125, 4
          %s1139 = int_to_ptr.vmem [resolvable:$true] %s1138
          %1144 = dma.vmem_to_hbm [thread:$0]  %s1139, 2048, %s1137, %s1122, 128, 128, 8
        $region40: #{tpu_custom_call.1} parent=35 // pred_fallthru
          _
      $region36: #{tpu_custom_call.1} parent=5 // pred_fallthru
        _
      %p1145 = scmp.le.s32.totalorder 2, %s13
      // Predicated region
      $region41: #{tpu_custom_call.1} parent=5 // pred_check
        %p1146 = pneg %p1145
      $region42: #{tpu_custom_call.1} parent=5 // pred_check_branch
        %1148 = sbr.rel (%p1146) target = $region44
      $region43: #{tpu_custom_call.1} parent=5 // pred_region
        %s1149 = ssub.s32 %s13, 2
        // Predicated region
        $region45: #{tpu_custom_call.1} parent=43 // pred_check
          %p1150 = pneg %p145
        $region46: #{tpu_custom_call.1} parent=43 // pred_check_branch
          %1152 = sbr.rel (%p1150) target = $region48
        $region47: #{tpu_custom_call.1} parent=43 // pred_region
          %s1153 = sand.u32 %s130, 1
          %s1154 = scalar_lea.sflag [#allocation4], %s1153
          %s1155 = sand.u32 %s130, 1
          %s1156 = smul.addr %s1155, 128
          %s1157 = scalar_lea.vmem [#allocation3], %s1156
          %1158 = dma.done %s1154, 2048
        $region48: #{tpu_custom_call.1} parent=43 // pred_fallthru
          _
      $region44: #{tpu_custom_call.1} parent=5 // pred_fallthru
        _
    $region6: #{tpu_custom_call.1} parent=1 // loop_footer
      %s17 = sadd.s32 1, %s13
    $region7: #{tpu_custom_call.1} parent=1 // loop_footer_branch
      %12 = sbr.rel target = $region3
    $region8: #{tpu_custom_call.1} parent=1 // loop_exit
      _
    %1159 = vsyncpa [#allocation4], 1
    %s1160 = scalar_lea.sflag [#allocation4], 1
    %1161 = vsyncpa %s1160, 1

</llo_original>
